<compile_context>
chip_gen: v7x
topology: tpu7x:2x2x1
jax: 0.10.0
libtpu: 0.0.40
codegen_flags: <defaults>
</compile_context>

<pallas_src>
import jax
import jax.numpy as jnp
from jax import lax
from jax.experimental import pallas as pl
from jax.experimental.pallas import tpu as pltpu

BN_EPS = 1e-5
MATMUL_DTYPE = jnp.bfloat16   # MXU input dtype (f32 accumulation)
ACT_DTYPE = jnp.bfloat16      # inter-pass activation storage dtype


# --------------------------------------------------------------------------
# in-kernel helpers
# --------------------------------------------------------------------------
def _conv3x3(inp_lp, w_ref):
    """inp_lp: (h, w, cin) bf16 (already cast).  w_ref: Ref (3, 3*cin, cout) bf16.
    Same-padded 3x3 conv as 3 ky-unrolled MXU matmuls (K = 3*cin each), f32 acc.
    Returns (h*w, cout) f32."""
    h, w, cin = inp_lp.shape
    cout = w_ref.shape[-1]
    # same-padding by concatenation, in bf16 (no full-tensor select, no extra cast)
    zr = jnp.zeros((1, w, cin), inp_lp.dtype)
    xp = jnp.concatenate([zr, inp_lp, zr], axis=0)        # (h+2, w,   cin)
    zc = jnp.zeros((h + 2, 1, cin), inp_lp.dtype)
    xp = jnp.concatenate([zc, xp, zc], axis=1)            # (h+2, w+2, cin)
    acc = jnp.zeros((h * w, cout), jnp.float32)
    for ky in range(3):                                   # unrolled: 3*cin patch slab live
        taps = [xp[ky:ky + h, kx:kx + w, :] for kx in range(3)]
        patches = jnp.concatenate(taps, axis=-1).reshape(h * w, 3 * cin)
        acc = acc + jnp.dot(patches, w_ref[ky], preferred_element_type=jnp.float32)
    return acc


def _moments(acc2d):
    """Per-sample sum and sum-of-squares over rows -> (1, 2*cout) f32."""
    s = jnp.sum(acc2d, axis=0, keepdims=True)
    ss = jnp.sum(acc2d * acc2d, axis=0, keepdims=True)
    return jnp.concatenate([s, ss], axis=-1)


# --------------------------------------------------------------------------
# wrapper-side BN reduction (tiny)
# --------------------------------------------------------------------------
def _bn_affine(mom, gamma, beta, count, cout):
    """Reduce per-sample (sum, sumsq) partials into fused BN scale/shift (f32)."""
    s = jnp.sum(mom[:, 0, :cout], axis=0)
    ss = jnp.sum(mom[:, 0, cout:], axis=0)
    mean = s / count
    # NOTE: E[x^2]-mean^2 in f32; fine for roughly centered conv outputs.
    var = jnp.maximum(ss / count - mean * mean, 0.0)
    scale = gamma * lax.rsqrt(var + BN_EPS)
    shift = beta - mean * scale
    return (scale.reshape(1, cout).astype(jnp.float32),
            shift.reshape(1, cout).astype(jnp.float32))


# --------------------------------------------------------------------------
# module forward
# --------------------------------------------------------------------------
def down_pallas(x_nchw, params):
    """x_nchw: (N, Cin, H, W) -> (N, Cout, H//2, W//2)."""
    w1, _b1, g1, be1, w2, _b2, g2, be2 = params   # conv biases cancel under BN -> unused
    x = x_nchw.astype(jnp.float32)
    N, Cin, H, W = x.shape
    He, We = (H // 2) * 2, (W // 2) * 2
    if (He, We) != (H, W):                # nn.MaxPool2d(2) floors odd spatial sizes
        x = x[:, :, :He, :We]
    h, w = He // 2, We // 2
    Cout = w1.shape[-1]

    x_flat = x.reshape(N, Cin, He * We)   # contiguous -> free reshape, lane-dense read
    # HWIO (3,3,Ci,Co) -> (3, 3*Ci, Co): row order (kx, ci) matches the im2col taps
    w1r = w1.reshape(3, 3 * Cin, Cout).astype(MATMUL_DTYPE)
    w2r = w2.reshape(3, 3 * Cout, Cout).astype(MATMUL_DTYPE)

    try:
        cap = pltpu.get_tpu_info().vmem_capacity_bytes
        vmem_limit = min(int(cap * 3 // 4), 100 * 1024 * 1024)   # ~48 MiB v7x, ~96 MiB v5e/v6e
    except Exception:
        vmem_limit = 48 * 1024 * 1024

    cp = pltpu.CompilerParams(
        dimension_semantics=("parallel",),      # megacore-shard the batch axis
        vmem_limit_bytes=vmem_limit,
    )

    # ---------------- kernels (closures over static shapes) ----------------
    def pool_conv_kernel(x_ref, w_ref, y_ref, mom_ref):
        """NCHW read + MaxPool2d(2) + Conv1 (+ BN1 partial moments)."""
        xc = x_ref[...].reshape(Cin, He * We)
        xhwc = xc.T.reshape(He, We, Cin)                 # fused NCHW->HWC (2-D transpose)
        xh = xhwc.reshape(h, 2, We, Cin)                 # split H: layout-free
        xh = jnp.maximum(xh[:, 0], xh[:, 1])             # (h, We, Cin)  f32 VPU max
        xw = xh.reshape(h, w, 2, Cin)                    # split W (one relayout)
        pooled = jnp.maximum(xw[:, :, 0], xw[:, :, 1])   # (h, w, Cin)   f32 VPU max
        acc = _conv3x3(pooled.astype(MATMUL_DTYPE), w_ref)   # (h*w, Cout) f32
        y_ref[...] = acc.astype(y_ref.dtype).reshape(y_ref.shape)       # bf16 store
        mom_ref[...] = _moments(acc).reshape(mom_ref.shape)             # f32

    def bn_relu_conv_kernel(y_ref, sc_ref, sh_ref, w_ref, o_ref, mom_ref):
        """BN1(affine, f32) + ReLU + Conv2 (+ BN2 partial moments)."""
        a = y_ref[...].reshape(h * w, Cout).astype(jnp.float32)
        a = jnp.maximum(a * sc_ref[...] + sh_ref[...], 0.0)             # f32 VPU
        acc = _conv3x3(a.astype(MATMUL_DTYPE).reshape(h, w, Cout), w_ref)
        o_ref[...] = acc.astype(o_ref.dtype).reshape(o_ref.shape)       # bf16 store
        mom_ref[...] = _moments(acc).reshape(mom_ref.shape)

    def bn_relu_kernel(y_ref, sc_ref, sh_ref, o_ref):
        """BN2(affine, f32) + ReLU + fused HWC->CHW write."""
        a = y_ref[...].reshape(h * w, Cout).astype(jnp.float32)
        a = jnp.maximum(a * sc_ref[...] + sh_ref[...], 0.0)
        o_ref[...] = a.T.reshape(o_ref.shape)            # (Cout, h*w) lane-dense store

    # ---- pass 1: maxpool + conv1, emit y1 (bf16) and per-sample BN1 partials ----
    y1, mom1 = pl.pallas_call(
        pool_conv_kernel,
        grid=(N,),
        in_specs=[
            pl.BlockSpec((1, Cin, He * We), lambda n: (n, 0, 0)),
            pl.BlockSpec((3, 3 * Cin, Cout), lambda n: (0, 0, 0)),
        ],
        out_specs=[
            pl.BlockSpec((1, h * w, Cout), lambda n: (n, 0, 0)),
            pl.BlockSpec((1, 1, 2 * Cout), lambda n: (n, 0, 0)),
        ],
        out_shape=[
            jax.ShapeDtypeStruct((N, h * w, Cout), ACT_DTYPE),
            jax.ShapeDtypeStruct((N, 1, 2 * Cout), jnp.float32),
        ],
        compiler_params=cp,
    )(x_flat, w1r)

    sc1, sh1 = _bn_affine(mom1, g1, be1, N * h * w, Cout)

    # ---- pass 2: bn1 + relu + conv2, emit y2 (bf16) and per-sample BN2 partials ----
    y2, mom2 = pl.pallas_call(
        bn_relu_conv_kernel,
        grid=(N,),
        in_specs=[
            pl.BlockSpec((1, h * w, Cout), lambda n: (n, 0, 0)),
            pl.BlockSpec((1, Cout), lambda n: (0, 0)),
            pl.BlockSpec((1, Cout), lambda n: (0, 0)),
            pl.BlockSpec((3, 3 * Cout, Cout), lambda n: (0, 0, 0)),
        ],
        out_specs=[
            pl.BlockSpec((1, h * w, Cout), lambda n: (n, 0, 0)),
            pl.BlockSpec((1, 1, 2 * Cout), lambda n: (n, 0, 0)),
        ],
        out_shape=[
            jax.ShapeDtypeStruct((N, h * w, Cout), ACT_DTYPE),
            jax.ShapeDtypeStruct((N, 1, 2 * Cout), jnp.float32),
        ],
        compiler_params=cp,
    )(y1, sc1, sh1, w2r)

    sc2, sh2 = _bn_affine(mom2, g2, be2, N * h * w, Cout)

    # ---- pass 3: bn2 + relu, NCHW output (lane-dense (Cout, h*w) store) ----
    out = pl.pallas_call(
        bn_relu_kernel,
        grid=(N,),
        in_specs=[
            pl.BlockSpec((1, h * w, Cout), lambda n: (n, 0, 0)),
            pl.BlockSpec((1, Cout), lambda n: (0, 0)),
            pl.BlockSpec((1, Cout), lambda n: (0, 0)),
        ],
        out_specs=pl.BlockSpec((1, Cout, h * w), lambda n: (n, 0, 0)),
        out_shape=jax.ShapeDtypeStruct((N, Cout, h * w), jnp.float32),
        compiler_params=cp,
    )(y2, sc2, sh2)

    return out.reshape(N, Cout, h, w)      # contiguous -> free reshape to NCHW 4-D


# ---------------- pure-JAX reference (sanity check, f32 everywhere) ----------------
def down_ref(x_nchw, params):
    w1, b1, g1, be1, w2, b2, g2, be2 = params
    x = jnp.transpose(x_nchw, (0, 2, 3, 1)).astype(jnp.float32)
    N, H, W, Cin = x.shape
    x = jnp.max(x.reshape(N, H // 2, 2, W // 2, 2, Cin), axis=(2, 4))

    def conv(inp, w, b):
        y = lax.conv_general_dilated(
            inp, w, window_strides=(1, 1), padding="SAME",
            dimension_numbers=("NHWC", "HWIO", "NHWC"))
        return y + b[None, None, None, :]

    def bn_relu(y, g, be):
        mean = jnp.mean(y, axis=(0, 1, 2))
        var = jnp.mean((y - mean) ** 2, axis=(0, 1, 2))
        out = (y - mean) * lax.rsqrt(var + BN_EPS) * g + be
        return jnp.maximum(out, 0.0)

    y = bn_relu(conv(x, w1, b1), g1, be1)
    y = bn_relu(conv(y, w2, b2), g2, be2)
    return jnp.transpose(y, (0, 3, 1, 2))


def init_params(key, in_channels, out_channels):
    k1, k2, k3, k4 = jax.random.split(key, 4)
    fan1 = in_channels * 9
    fan2 = out_channels * 9
    w1 = jax.random.normal(k1, (3, 3, in_channels, out_channels), jnp.float32) / jnp.sqrt(fan1)
    b1 = jax.random.normal(k2, (out_channels,), jnp.float32) * 0.01
    w2 = jax.random.normal(k3, (3, 3, out_channels, out_channels), jnp.float32) / jnp.sqrt(fan2)
    b2 = jax.random.normal(k4, (out_channels,), jnp.float32) * 0.01
    g1 = jnp.ones((out_channels,), jnp.float32)    # BatchNorm gamma init
    be1 = jnp.zeros((out_channels,), jnp.float32)  # BatchNorm beta init
    g2 = jnp.ones((out_channels,), jnp.float32)
    be2 = jnp.zeros((out_channels,), jnp.float32)
    return (w1, b1, g1, be1, w2, b2, g2, be2)


if __name__ == "__main__":
    key = jax.random.PRNGKey(0)
    kx, kp = jax.random.split(key)

    N, Cin, H, W = 2, 4, 16, 16
    Cout = 8
    x = jax.random.normal(kx, (N, Cin, H, W), jnp.float32)
    params = init_params(kp, Cin, Cout)

    down = jax.jit(down_pallas)
    out = jax.block_until_ready(down(x, params))

    ref = jax.block_until_ready(down_ref(x, params))
    assert out.shape == (N, Cout, H // 2, W // 2), out.shape
    # bf16 MXU inputs + bf16 inter-pass activations (f32 accumulation / BN math) ->
    # allow a modest tolerance vs. the all-f32 reference
    max_err = float(jnp.max(jnp.abs(out - ref)))
    assert max_err < 1e-1, max_err

    print("KERNEL_OK")
</pallas_src>

<mosaic_0001>
module attributes {stable_mosaic.version = 11 : i64} {
  func.func @pool_conv_kernel(%arg0: i32, %arg1: memref<1x4x256xf32, #tpu.memory_space<vmem>>, %arg2: memref<3x12x8xbf16, #tpu.memory_space<vmem>>, %arg3: memref<1x64x8xbf16, #tpu.memory_space<vmem>>, %arg4: memref<1x1x16xf32, #tpu.memory_space<vmem>>) attributes {dimension_semantics = [#tpu.dimension_semantics<parallel>], iteration_bounds = array<i64: 2>, scalar_prefetch = 0 : i64, scratch_operands = 0 : i64, tpu.core_type = #tpu.core_type<tc>, window_params = [{transform_indices = @transform_0, window_bounds = array<i64: 1, 4, 256>}, {pipeline_mode = #tpu.pipeline_mode<synchronous>, transform_indices = @transform_1, window_bounds = array<i64: 3, 12, 8>}, {transform_indices = @transform_2, window_bounds = array<i64: 1, 64, 8>}, {transform_indices = @transform_3, window_bounds = array<i64: 1, 1, 16>}]} {
    %c0 = arith.constant 0 : index
    %c0_0 = arith.constant 0 : index
    %c0_1 = arith.constant 0 : index
    %0 = vector.load %arg1[%c0, %c0_0, %c0_1] : memref<1x4x256xf32, #tpu.memory_space<vmem>>, vector<1x4x256xf32>
    %1 = vector.shape_cast %0 : vector<1x4x256xf32> to vector<4x256xf32>
    %2 = tpu.transpose %1, [1, 0] : vector<4x256xf32> -> vector<256x4xf32>
    %3 = vector.shape_cast %2 : vector<256x4xf32> to vector<16x16x4xf32>
    %4 = vector.shape_cast %3 : vector<16x16x4xf32> to vector<8x2x16x4xf32>
    %5 = vector.extract_strided_slice %4 {offsets = [0, 0, 0, 0], sizes = [8, 1, 16, 4], strides = [1, 1, 1, 1]} : vector<8x2x16x4xf32> to vector<8x1x16x4xf32>
    %6 = vector.shape_cast %5 : vector<8x1x16x4xf32> to vector<8x16x4xf32>
    %7 = vector.extract_strided_slice %4 {offsets = [0, 1, 0, 0], sizes = [8, 1, 16, 4], strides = [1, 1, 1, 1]} : vector<8x2x16x4xf32> to vector<8x1x16x4xf32>
    %8 = vector.shape_cast %7 : vector<8x1x16x4xf32> to vector<8x16x4xf32>
    %9 = arith.maximumf %6, %8 : vector<8x16x4xf32>
    %10 = vector.shape_cast %9 : vector<8x16x4xf32> to vector<8x8x2x4xf32>
    %11 = vector.extract_strided_slice %10 {offsets = [0, 0, 0, 0], sizes = [8, 8, 1, 4], strides = [1, 1, 1, 1]} : vector<8x8x2x4xf32> to vector<8x8x1x4xf32>
    %12 = vector.shape_cast %11 : vector<8x8x1x4xf32> to vector<8x8x4xf32>
    %13 = vector.extract_strided_slice %10 {offsets = [0, 0, 1, 0], sizes = [8, 8, 1, 4], strides = [1, 1, 1, 1]} : vector<8x8x2x4xf32> to vector<8x8x1x4xf32>
    %14 = vector.shape_cast %13 : vector<8x8x1x4xf32> to vector<8x8x4xf32>
    %15 = arith.maximumf %12, %14 : vector<8x8x4xf32>
    %16 = arith.truncf %15 : vector<8x8x4xf32> to vector<8x8x4xbf16>
    %cst = arith.constant 0.000000e+00 : bf16
    %17 = vector.broadcast %cst : bf16 to vector<1x8x4xbf16>
    %18 = tpu.concatenate %17, %16, %17 in 0 : vector<1x8x4xbf16>, vector<8x8x4xbf16>, vector<1x8x4xbf16> -> vector<10x8x4xbf16>
    %cst_2 = arith.constant 0.000000e+00 : bf16
    %19 = vector.broadcast %cst_2 : bf16 to vector<10x1x4xbf16>
    %20 = tpu.concatenate %19, %18, %19 in 1 : vector<10x1x4xbf16>, vector<10x8x4xbf16>, vector<10x1x4xbf16> -> vector<10x10x4xbf16>
    %cst_3 = arith.constant 0.000000e+00 : f32
    %21 = vector.broadcast %cst_3 : f32 to vector<64x8xf32>
    %22 = vector.extract_strided_slice %20 {offsets = [0, 0, 0], sizes = [8, 8, 4], strides = [1, 1, 1]} : vector<10x10x4xbf16> to vector<8x8x4xbf16>
    %23 = vector.extract_strided_slice %20 {offsets = [0, 1, 0], sizes = [8, 8, 4], strides = [1, 1, 1]} : vector<10x10x4xbf16> to vector<8x8x4xbf16>
    %24 = vector.extract_strided_slice %20 {offsets = [0, 2, 0], sizes = [8, 8, 4], strides = [1, 1, 1]} : vector<10x10x4xbf16> to vector<8x8x4xbf16>
    %25 = tpu.concatenate %22, %23, %24 in 2 : vector<8x8x4xbf16>, vector<8x8x4xbf16>, vector<8x8x4xbf16> -> vector<8x8x12xbf16>
    %26 = vector.shape_cast %25 : vector<8x8x12xbf16> to vector<64x12xbf16>
    %c0_4 = arith.constant 0 : index
    %c0_5 = arith.constant 0 : index
    %c0_6 = arith.constant 0 : index
    %27 = vector.load %arg2[%c0_4, %c0_5, %c0_6] : memref<3x12x8xbf16, #tpu.memory_space<vmem>>, vector<1x12x8xbf16>
    %28 = vector.shape_cast %27 : vector<1x12x8xbf16> to vector<12x8xbf16>
    %cst_7 = arith.constant dense<0.000000e+00> : vector<64x8xf32>
    %29 = tpu.matmul %26, %28, %cst_7 {dimension_numbers = #tpu.dot_dimension_numbers<[1], [0], [0], [1], [0, 0, 1, 1], [], []>} : vector<64x12xbf16>, vector<12x8xbf16>, vector<64x8xf32> -> vector<64x8xf32>
    %30 = arith.addf %21, %29 : vector<64x8xf32>
    %31 = vector.extract_strided_slice %20 {offsets = [1, 0, 0], sizes = [8, 8, 4], strides = [1, 1, 1]} : vector<10x10x4xbf16> to vector<8x8x4xbf16>
    %32 = vector.extract_strided_slice %20 {offsets = [1, 1, 0], sizes = [8, 8, 4], strides = [1, 1, 1]} : vector<10x10x4xbf16> to vector<8x8x4xbf16>
    %33 = vector.extract_strided_slice %20 {offsets = [1, 2, 0], sizes = [8, 8, 4], strides = [1, 1, 1]} : vector<10x10x4xbf16> to vector<8x8x4xbf16>
    %34 = tpu.concatenate %31, %32, %33 in 2 : vector<8x8x4xbf16>, vector<8x8x4xbf16>, vector<8x8x4xbf16> -> vector<8x8x12xbf16>
    %35 = vector.shape_cast %34 : vector<8x8x12xbf16> to vector<64x12xbf16>
    %c1 = arith.constant 1 : index
    %c0_8 = arith.constant 0 : index
    %c0_9 = arith.constant 0 : index
    %36 = vector.load %arg2[%c1, %c0_8, %c0_9] : memref<3x12x8xbf16, #tpu.memory_space<vmem>>, vector<1x12x8xbf16>
    %37 = vector.shape_cast %36 : vector<1x12x8xbf16> to vector<12x8xbf16>
    %cst_10 = arith.constant dense<0.000000e+00> : vector<64x8xf32>
    %38 = tpu.matmul %35, %37, %cst_10 {dimension_numbers = #tpu.dot_dimension_numbers<[1], [0], [0], [1], [0, 0, 1, 1], [], []>} : vector<64x12xbf16>, vector<12x8xbf16>, vector<64x8xf32> -> vector<64x8xf32>
    %39 = arith.addf %30, %38 : vector<64x8xf32>
    %40 = vector.extract_strided_slice %20 {offsets = [2, 0, 0], sizes = [8, 8, 4], strides = [1, 1, 1]} : vector<10x10x4xbf16> to vector<8x8x4xbf16>
    %41 = vector.extract_strided_slice %20 {offsets = [2, 1, 0], sizes = [8, 8, 4], strides = [1, 1, 1]} : vector<10x10x4xbf16> to vector<8x8x4xbf16>
    %42 = vector.extract_strided_slice %20 {offsets = [2, 2, 0], sizes = [8, 8, 4], strides = [1, 1, 1]} : vector<10x10x4xbf16> to vector<8x8x4xbf16>
    %43 = tpu.concatenate %40, %41, %42 in 2 : vector<8x8x4xbf16>, vector<8x8x4xbf16>, vector<8x8x4xbf16> -> vector<8x8x12xbf16>
    %44 = vector.shape_cast %43 : vector<8x8x12xbf16> to vector<64x12xbf16>
    %c2 = arith.constant 2 : index
    %c0_11 = arith.constant 0 : index
    %c0_12 = arith.constant 0 : index
    %45 = vector.load %arg2[%c2, %c0_11, %c0_12] : memref<3x12x8xbf16, #tpu.memory_space<vmem>>, vector<1x12x8xbf16>
    %46 = vector.shape_cast %45 : vector<1x12x8xbf16> to vector<12x8xbf16>
    %cst_13 = arith.constant dense<0.000000e+00> : vector<64x8xf32>
    %47 = tpu.matmul %44, %46, %cst_13 {dimension_numbers = #tpu.dot_dimension_numbers<[1], [0], [0], [1], [0, 0, 1, 1], [], []>} : vector<64x12xbf16>, vector<12x8xbf16>, vector<64x8xf32> -> vector<64x8xf32>
    %48 = arith.addf %39, %47 : vector<64x8xf32>
    %49 = arith.truncf %48 : vector<64x8xf32> to vector<64x8xbf16>
    %50 = vector.shape_cast %49 : vector<64x8xbf16> to vector<1x64x8xbf16>
    %c0_14 = arith.constant 0 : index
    %c0_15 = arith.constant 0 : index
    %c0_16 = arith.constant 0 : index
    %51 = vector.load %arg3[%c0_14, %c0_15, %c0_16] : memref<1x64x8xbf16, #tpu.memory_space<vmem>>, vector<1x64x8xbf16>
    tpu.vector_store %arg3[%c0_14, %c0_15, %c0_16], %50 {strides = array<i32>} : memref<1x64x8xbf16, #tpu.memory_space<vmem>>, vector<1x64x8xbf16>,
    %cst_17 = arith.constant dense<0.000000e+00> : vector<8xf32>
    %52 = vector.multi_reduction <add>, %48, %cst_17 [0] : vector<64x8xf32> to vector<8xf32>
    %53 = vector.shape_cast %52 : vector<8xf32> to vector<1x8xf32>
    %54 = arith.mulf %48, %48 : vector<64x8xf32>
    %cst_18 = arith.constant dense<0.000000e+00> : vector<8xf32>
    %55 = vector.multi_reduction <add>, %54, %cst_18 [0] : vector<64x8xf32> to vector<8xf32>
    %56 = vector.shape_cast %55 : vector<8xf32> to vector<1x8xf32>
    %57 = tpu.concatenate %53, %56 in 1 : vector<1x8xf32>, vector<1x8xf32> -> vector<1x16xf32>
    %58 = vector.shape_cast %57 : vector<1x16xf32> to vector<1x1x16xf32>
    %c0_19 = arith.constant 0 : index
    %c0_20 = arith.constant 0 : index
    %c0_21 = arith.constant 0 : index
    %59 = vector.load %arg4[%c0_19, %c0_20, %c0_21] : memref<1x1x16xf32, #tpu.memory_space<vmem>>, vector<1x1x16xf32>
    tpu.vector_store %arg4[%c0_19, %c0_20, %c0_21], %58 {strides = array<i32>} : memref<1x1x16xf32, #tpu.memory_space<vmem>>, vector<1x1x16xf32>,
    return
  }
  func.func @transform_0(%arg0: i32) -> (i32, i32, i32) {
    %c0_i32 = arith.constant 0 : i32
    %c0_i32_0 = arith.constant 0 : i32
    %c0_i32_1 = arith.constant 0 : i32
    return %arg0, %c0_i32, %c0_i32_0 : i32, i32, i32
  }
  func.func @transform_1(%arg0: i32) -> (i32, i32, i32) {
    %c0_i32 = arith.constant 0 : i32
    %c0_i32_0 = arith.constant 0 : i32
    %c0_i32_1 = arith.constant 0 : i32
    %c0_i32_2 = arith.constant 0 : i32
    return %c0_i32, %c0_i32_0, %c0_i32_1 : i32, i32, i32
  }
  func.func @transform_2(%arg0: i32) -> (i32, i32, i32) {
    %c0_i32 = arith.constant 0 : i32
    %c0_i32_0 = arith.constant 0 : i32
    %c0_i32_1 = arith.constant 0 : i32
    return %arg0, %c0_i32, %c0_i32_0 : i32, i32, i32
  }
  func.func @transform_3(%arg0: i32) -> (i32, i32, i32) {
    %c0_i32 = arith.constant 0 : i32
    %c0_i32_0 = arith.constant 0 : i32
    %c0_i32_1 = arith.constant 0 : i32
    return %arg0, %c0_i32, %c0_i32_0 : i32, i32, i32
  }
}

module attributes {stable_mosaic.version = 11 : i64} {
  func.func @bn_relu_conv_kernel(%arg0: i32, %arg1: memref<1x64x8xbf16, #tpu.memory_space<vmem>>, %arg2: memref<1x8xf32, #tpu.memory_space<vmem>>, %arg3: memref<1x8xf32, #tpu.memory_space<vmem>>, %arg4: memref<3x24x8xbf16, #tpu.memory_space<vmem>>, %arg5: memref<1x64x8xbf16, #tpu.memory_space<vmem>>, %arg6: memref<1x1x16xf32, #tpu.memory_space<vmem>>) attributes {dimension_semantics = [#tpu.dimension_semantics<parallel>], iteration_bounds = array<i64: 2>, scalar_prefetch = 0 : i64, scratch_operands = 0 : i64, tpu.core_type = #tpu.core_type<tc>, window_params = [{transform_indices = @transform_0, window_bounds = array<i64: 1, 64, 8>}, {pipeline_mode = #tpu.pipeline_mode<synchronous>, transform_indices = @transform_1, window_bounds = array<i64: 1, 8>}, {pipeline_mode = #tpu.pipeline_mode<synchronous>, transform_indices = @transform_2, window_bounds = array<i64: 1, 8>}, {pipeline_mode = #tpu.pipeline_mode<synchronous>, transform_indices = @transform_3, window_bounds = array<i64: 3, 24, 8>}, {transform_indices = @transform_4, window_bounds = array<i64: 1, 64, 8>}, {transform_indices = @transform_5, window_bounds = array<i64: 1, 1, 16>}]} {
    %c0 = arith.constant 0 : index
    %c0_0 = arith.constant 0 : index
    %c0_1 = arith.constant 0 : index
    %0 = vector.load %arg1[%c0, %c0_0, %c0_1] : memref<1x64x8xbf16, #tpu.memory_space<vmem>>, vector<1x64x8xbf16>
    %1 = vector.shape_cast %0 : vector<1x64x8xbf16> to vector<64x8xbf16>
    %2 = arith.extf %1 : vector<64x8xbf16> to vector<64x8xf32>
    %c0_2 = arith.constant 0 : index
    %c0_3 = arith.constant 0 : index
    %3 = vector.load %arg2[%c0_2, %c0_3] : memref<1x8xf32, #tpu.memory_space<vmem>>, vector<1x8xf32>
    %4 = vector.broadcast %3 : vector<1x8xf32> to vector<64x8xf32>
    %5 = arith.mulf %2, %4 : vector<64x8xf32>
    %c0_4 = arith.constant 0 : index
    %c0_5 = arith.constant 0 : index
    %6 = vector.load %arg3[%c0_4, %c0_5] : memref<1x8xf32, #tpu.memory_space<vmem>>, vector<1x8xf32>
    %7 = vector.broadcast %6 : vector<1x8xf32> to vector<64x8xf32>
    %8 = arith.addf %5, %7 : vector<64x8xf32>
    %cst = arith.constant 0.000000e+00 : f32
    %9 = vector.broadcast %cst : f32 to vector<64x8xf32>
    %10 = arith.maximumf %8, %9 : vector<64x8xf32>
    %11 = arith.truncf %10 : vector<64x8xf32> to vector<64x8xbf16>
    %12 = vector.shape_cast %11 : vector<64x8xbf16> to vector<8x8x8xbf16>
    %cst_6 = arith.constant 0.000000e+00 : bf16
    %13 = vector.broadcast %cst_6 : bf16 to vector<1x8x8xbf16>
    %14 = tpu.concatenate %13, %12, %13 in 0 : vector<1x8x8xbf16>, vector<8x8x8xbf16>, vector<1x8x8xbf16> -> vector<10x8x8xbf16>
    %cst_7 = arith.constant 0.000000e+00 : bf16
    %15 = vector.broadcast %cst_7 : bf16 to vector<10x1x8xbf16>
    %16 = tpu.concatenate %15, %14, %15 in 1 : vector<10x1x8xbf16>, vector<10x8x8xbf16>, vector<10x1x8xbf16> -> vector<10x10x8xbf16>
    %cst_8 = arith.constant 0.000000e+00 : f32
    %17 = vector.broadcast %cst_8 : f32 to vector<64x8xf32>
    %18 = vector.extract_strided_slice %16 {offsets = [0, 0, 0], sizes = [8, 8, 8], strides = [1, 1, 1]} : vector<10x10x8xbf16> to vector<8x8x8xbf16>
    %19 = vector.extract_strided_slice %16 {offsets = [0, 1, 0], sizes = [8, 8, 8], strides = [1, 1, 1]} : vector<10x10x8xbf16> to vector<8x8x8xbf16>
    %20 = vector.extract_strided_slice %16 {offsets = [0, 2, 0], sizes = [8, 8, 8], strides = [1, 1, 1]} : vector<10x10x8xbf16> to vector<8x8x8xbf16>
    %21 = tpu.concatenate %18, %19, %20 in 2 : vector<8x8x8xbf16>, vector<8x8x8xbf16>, vector<8x8x8xbf16> -> vector<8x8x24xbf16>
    %22 = vector.shape_cast %21 : vector<8x8x24xbf16> to vector<64x24xbf16>
    %c0_9 = arith.constant 0 : index
    %c0_10 = arith.constant 0 : index
    %c0_11 = arith.constant 0 : index
    %23 = vector.load %arg4[%c0_9, %c0_10, %c0_11] : memref<3x24x8xbf16, #tpu.memory_space<vmem>>, vector<1x24x8xbf16>
    %24 = vector.shape_cast %23 : vector<1x24x8xbf16> to vector<24x8xbf16>
    %cst_12 = arith.constant dense<0.000000e+00> : vector<64x8xf32>
    %25 = tpu.matmul %22, %24, %cst_12 {dimension_numbers = #tpu.dot_dimension_numbers<[1], [0], [0], [1], [0, 0, 1, 1], [], []>} : vector<64x24xbf16>, vector<24x8xbf16>, vector<64x8xf32> -> vector<64x8xf32>
    %26 = arith.addf %17, %25 : vector<64x8xf32>
    %27 = vector.extract_strided_slice %16 {offsets = [1, 0, 0], sizes = [8, 8, 8], strides = [1, 1, 1]} : vector<10x10x8xbf16> to vector<8x8x8xbf16>
    %28 = vector.extract_strided_slice %16 {offsets = [1, 1, 0], sizes = [8, 8, 8], strides = [1, 1, 1]} : vector<10x10x8xbf16> to vector<8x8x8xbf16>
    %29 = vector.extract_strided_slice %16 {offsets = [1, 2, 0], sizes = [8, 8, 8], strides = [1, 1, 1]} : vector<10x10x8xbf16> to vector<8x8x8xbf16>
    %30 = tpu.concatenate %27, %28, %29 in 2 : vector<8x8x8xbf16>, vector<8x8x8xbf16>, vector<8x8x8xbf16> -> vector<8x8x24xbf16>
    %31 = vector.shape_cast %30 : vector<8x8x24xbf16> to vector<64x24xbf16>
    %c1 = arith.constant 1 : index
    %c0_13 = arith.constant 0 : index
    %c0_14 = arith.constant 0 : index
    %32 = vector.load %arg4[%c1, %c0_13, %c0_14] : memref<3x24x8xbf16, #tpu.memory_space<vmem>>, vector<1x24x8xbf16>
    %33 = vector.shape_cast %32 : vector<1x24x8xbf16> to vector<24x8xbf16>
    %cst_15 = arith.constant dense<0.000000e+00> : vector<64x8xf32>
    %34 = tpu.matmul %31, %33, %cst_15 {dimension_numbers = #tpu.dot_dimension_numbers<[1], [0], [0], [1], [0, 0, 1, 1], [], []>} : vector<64x24xbf16>, vector<24x8xbf16>, vector<64x8xf32> -> vector<64x8xf32>
    %35 = arith.addf %26, %34 : vector<64x8xf32>
    %36 = vector.extract_strided_slice %16 {offsets = [2, 0, 0], sizes = [8, 8, 8], strides = [1, 1, 1]} : vector<10x10x8xbf16> to vector<8x8x8xbf16>
    %37 = vector.extract_strided_slice %16 {offsets = [2, 1, 0], sizes = [8, 8, 8], strides = [1, 1, 1]} : vector<10x10x8xbf16> to vector<8x8x8xbf16>
    %38 = vector.extract_strided_slice %16 {offsets = [2, 2, 0], sizes = [8, 8, 8], strides = [1, 1, 1]} : vector<10x10x8xbf16> to vector<8x8x8xbf16>
    %39 = tpu.concatenate %36, %37, %38 in 2 : vector<8x8x8xbf16>, vector<8x8x8xbf16>, vector<8x8x8xbf16> -> vector<8x8x24xbf16>
    %40 = vector.shape_cast %39 : vector<8x8x24xbf16> to vector<64x24xbf16>
    %c2 = arith.constant 2 : index
    %c0_16 = arith.constant 0 : index
    %c0_17 = arith.constant 0 : index
    %41 = vector.load %arg4[%c2, %c0_16, %c0_17] : memref<3x24x8xbf16, #tpu.memory_space<vmem>>, vector<1x24x8xbf16>
    %42 = vector.shape_cast %41 : vector<1x24x8xbf16> to vector<24x8xbf16>
    %cst_18 = arith.constant dense<0.000000e+00> : vector<64x8xf32>
    %43 = tpu.matmul %40, %42, %cst_18 {dimension_numbers = #tpu.dot_dimension_numbers<[1], [0], [0], [1], [0, 0, 1, 1], [], []>} : vector<64x24xbf16>, vector<24x8xbf16>, vector<64x8xf32> -> vector<64x8xf32>
    %44 = arith.addf %35, %43 : vector<64x8xf32>
    %45 = arith.truncf %44 : vector<64x8xf32> to vector<64x8xbf16>
    %46 = vector.shape_cast %45 : vector<64x8xbf16> to vector<1x64x8xbf16>
    %c0_19 = arith.constant 0 : index
    %c0_20 = arith.constant 0 : index
    %c0_21 = arith.constant 0 : index
    %47 = vector.load %arg5[%c0_19, %c0_20, %c0_21] : memref<1x64x8xbf16, #tpu.memory_space<vmem>>, vector<1x64x8xbf16>
    tpu.vector_store %arg5[%c0_19, %c0_20, %c0_21], %46 {strides = array<i32>} : memref<1x64x8xbf16, #tpu.memory_space<vmem>>, vector<1x64x8xbf16>,
    %cst_22 = arith.constant dense<0.000000e+00> : vector<8xf32>
    %48 = vector.multi_reduction <add>, %44, %cst_22 [0] : vector<64x8xf32> to vector<8xf32>
    %49 = vector.shape_cast %48 : vector<8xf32> to vector<1x8xf32>
    %50 = arith.mulf %44, %44 : vector<64x8xf32>
    %cst_23 = arith.constant dense<0.000000e+00> : vector<8xf32>
    %51 = vector.multi_reduction <add>, %50, %cst_23 [0] : vector<64x8xf32> to vector<8xf32>
    %52 = vector.shape_cast %51 : vector<8xf32> to vector<1x8xf32>
    %53 = tpu.concatenate %49, %52 in 1 : vector<1x8xf32>, vector<1x8xf32> -> vector<1x16xf32>
    %54 = vector.shape_cast %53 : vector<1x16xf32> to vector<1x1x16xf32>
    %c0_24 = arith.constant 0 : index
    %c0_25 = arith.constant 0 : index
    %c0_26 = arith.constant 0 : index
    %55 = vector.load %arg6[%c0_24, %c0_25, %c0_26] : memref<1x1x16xf32, #tpu.memory_space<vmem>>, vector<1x1x16xf32>
    tpu.vector_store %arg6[%c0_24, %c0_25, %c0_26], %54 {strides = array<i32>} : memref<1x1x16xf32, #tpu.memory_space<vmem>>, vector<1x1x16xf32>,
    return
  }
  func.func @transform_0(%arg0: i32) -> (i32, i32, i32) {
    %c0_i32 = arith.constant 0 : i32
    %c0_i32_0 = arith.constant 0 : i32
    %c0_i32_1 = arith.constant 0 : i32
    return %arg0, %c0_i32, %c0_i32_0 : i32, i32, i32
  }
  func.func @transform_1(%arg0: i32) -> (i32, i32) {
    %c0_i32 = arith.constant 0 : i32
    %c0_i32_0 = arith.constant 0 : i32
    %c0_i32_1 = arith.constant 0 : i32
    return %c0_i32, %c0_i32_0 : i32, i32
  }
  func.func @transform_2(%arg0: i32) -> (i32, i32) {
    %c0_i32 = arith.constant 0 : i32
    %c0_i32_0 = arith.constant 0 : i32
    %c0_i32_1 = arith.constant 0 : i32
    return %c0_i32, %c0_i32_0 : i32, i32
  }
  func.func @transform_3(%arg0: i32) -> (i32, i32, i32) {
    %c0_i32 = arith.constant 0 : i32
    %c0_i32_0 = arith.constant 0 : i32
    %c0_i32_1 = arith.constant 0 : i32
    %c0_i32_2 = arith.constant 0 : i32
    return %c0_i32, %c0_i32_0, %c0_i32_1 : i32, i32, i32
  }
  func.func @transform_4(%arg0: i32) -> (i32, i32, i32) {
    %c0_i32 = arith.constant 0 : i32
    %c0_i32_0 = arith.constant 0 : i32
    %c0_i32_1 = arith.constant 0 : i32
    return %arg0, %c0_i32, %c0_i32_0 : i32, i32, i32
  }
  func.func @transform_5(%arg0: i32) -> (i32, i32, i32) {
    %c0_i32 = arith.constant 0 : i32
    %c0_i32_0 = arith.constant 0 : i32
    %c0_i32_1 = arith.constant 0 : i32
    return %arg0, %c0_i32, %c0_i32_0 : i32, i32, i32
  }
}

module attributes {stable_mosaic.version = 11 : i64} {
  func.func @bn_relu_kernel(%arg0: i32, %arg1: memref<1x64x8xbf16, #tpu.memory_space<vmem>>, %arg2: memref<1x8xf32, #tpu.memory_space<vmem>>, %arg3: memref<1x8xf32, #tpu.memory_space<vmem>>, %arg4: memref<1x8x64xf32, #tpu.memory_space<vmem>>) attributes {dimension_semantics = [#tpu.dimension_semantics<parallel>], iteration_bounds = array<i64: 2>, scalar_prefetch = 0 : i64, scratch_operands = 0 : i64, tpu.core_type = #tpu.core_type<tc>, window_params = [{transform_indices = @transform_0, window_bounds = array<i64: 1, 64, 8>}, {pipeline_mode = #tpu.pipeline_mode<synchronous>, transform_indices = @transform_1, window_bounds = array<i64: 1, 8>}, {pipeline_mode = #tpu.pipeline_mode<synchronous>, transform_indices = @transform_2, window_bounds = array<i64: 1, 8>}, {transform_indices = @transform_3, window_bounds = array<i64: 1, 8, 64>}]} {
    %c0 = arith.constant 0 : index
    %c0_0 = arith.constant 0 : index
    %c0_1 = arith.constant 0 : index
    %0 = vector.load %arg1[%c0, %c0_0, %c0_1] : memref<1x64x8xbf16, #tpu.memory_space<vmem>>, vector<1x64x8xbf16>
    %1 = vector.shape_cast %0 : vector<1x64x8xbf16> to vector<64x8xbf16>
    %2 = arith.extf %1 : vector<64x8xbf16> to vector<64x8xf32>
    %c0_2 = arith.constant 0 : index
    %c0_3 = arith.constant 0 : index
    %3 = vector.load %arg2[%c0_2, %c0_3] : memref<1x8xf32, #tpu.memory_space<vmem>>, vector<1x8xf32>
    %4 = vector.broadcast %3 : vector<1x8xf32> to vector<64x8xf32>
    %5 = arith.mulf %2, %4 : vector<64x8xf32>
    %c0_4 = arith.constant 0 : index
    %c0_5 = arith.constant 0 : index
    %6 = vector.load %arg3[%c0_4, %c0_5] : memref<1x8xf32, #tpu.memory_space<vmem>>, vector<1x8xf32>
    %7 = vector.broadcast %6 : vector<1x8xf32> to vector<64x8xf32>
    %8 = arith.addf %5, %7 : vector<64x8xf32>
    %cst = arith.constant 0.000000e+00 : f32
    %9 = vector.broadcast %cst : f32 to vector<64x8xf32>
    %10 = arith.maximumf %8, %9 : vector<64x8xf32>
    %11 = tpu.transpose %10, [1, 0] : vector<64x8xf32> -> vector<8x64xf32>
    %12 = vector.shape_cast %11 : vector<8x64xf32> to vector<1x8x64xf32>
    %c0_6 = arith.constant 0 : index
    %c0_7 = arith.constant 0 : index
    %c0_8 = arith.constant 0 : index
    %13 = vector.load %arg4[%c0_6, %c0_7, %c0_8] : memref<1x8x64xf32, #tpu.memory_space<vmem>>, vector<1x8x64xf32>
    tpu.vector_store %arg4[%c0_6, %c0_7, %c0_8], %12 {strides = array<i32>} : memref<1x8x64xf32, #tpu.memory_space<vmem>>, vector<1x8x64xf32>,
    return
  }
  func.func @transform_0(%arg0: i32) -> (i32, i32, i32) {
    %c0_i32 = arith.constant 0 : i32
    %c0_i32_0 = arith.constant 0 : i32
    %c0_i32_1 = arith.constant 0 : i32
    return %arg0, %c0_i32, %c0_i32_0 : i32, i32, i32
  }
  func.func @transform_1(%arg0: i32) -> (i32, i32) {
    %c0_i32 = arith.constant 0 : i32
    %c0_i32_0 = arith.constant 0 : i32
    %c0_i32_1 = arith.constant 0 : i32
    return %c0_i32, %c0_i32_0 : i32, i32
  }
  func.func @transform_2(%arg0: i32) -> (i32, i32) {
    %c0_i32 = arith.constant 0 : i32
    %c0_i32_0 = arith.constant 0 : i32
    %c0_i32_1 = arith.constant 0 : i32
    return %c0_i32, %c0_i32_0 : i32, i32
  }
  func.func @transform_3(%arg0: i32) -> (i32, i32, i32) {
    %c0_i32 = arith.constant 0 : i32
    %c0_i32_0 = arith.constant 0 : i32
    %c0_i32_1 = arith.constant 0 : i32
    return %arg0, %c0_i32, %c0_i32_0 : i32, i32, i32
  }
}

</mosaic_0001>

<llo_original>
// kernel: down_pallas.5
$region0: #{down_pallas.5}
  #allocation0 [shape = 'u32[]', space=smem, size = 0x4, offset = 0x4, fixed_abs, tag = 'smem constant byte address 0x4 - core index']
  #allocation1 [shape = 'u32[144,128]{1,0:T(1,128)}', space=vmem, size = 0x12000, scoped, tag = 'internal scratch']
  %s0 = inlined_call_operand.vmem [shape: bf16[2,64,8], index: 0, kind: input, shape index: {}]
  %s1 = inlined_call_operand.vmem [shape: f32[1,8], index: 1, kind: input, shape index: {}]
  %s2 = inlined_call_operand.vmem [shape: f32[1,8], index: 2, kind: input, shape index: {}]
  %s3 = inlined_call_operand.vmem [shape: f32[2,8,64], index: 3, kind: output, shape index: {}]
  %s4 = sld [smem:[#allocation0]]
  $region45: #{down_pallas.5} parent=0
    _
  %s6 = ssub.s32 1, %s4
  %s7 = scalar_select 0, %s6, %s4
  loop: start=0, step=1, limit=4
  $region2: #{down_pallas.5} parent=0 // loop_pre_header
    _
  $region3: #{down_pallas.5} parent=0 // loop_header
    %s9 = sphi 0, %s13
    %p10 = scmp.ge.s32.totalorder %s9, 4
    %s19 = sphi 0, %s21
    %s22 = sphi 0, %s19
    %s23 = sphi 0, %s22
    %s39 = sphi 0, %s23
    %s43 = sphi 0, %s43
    %s45 = sphi 0, %s43
    %s46 = sphi 0, %s45
    %s60 = sphi 0, %s46
    %s64 = sphi 0, %s64
    %s66 = sphi 0, %s64
    %s67 = sphi 0, %s66
    %s81 = sphi 0, %s67
    %s87 = sphi 0, %s89
    %s90 = sphi 0, %s87
    %s91 = sphi 0, %s90
    %s107 = sphi 0, %s91
  $region4: #{down_pallas.5} parent=0 // loop_header_branch
    %12 = sbr.rel (%p10) target = $region8
  $region5: #{down_pallas.5} parent=0 // loop_body
    %s14 = ssub.s32 %s9, 1
    %s15 = ssub.s32 %s9, 2
    %s16 = sadd.s32 %s9, 1
    %s17 = ssub.s32 %s9, %s16
    %p18 = scmp.eq.s32.totalorder %s17, 0
    %s20 = sadd.s32 %s19, 1
    %s21 = scalar_select %p18, %s19, %s20
    %p24 = pneg %p18
    %p25 = scmp.eq.s32.totalorder %s9, 1
    %p26 = por %p24, %p25
    %p27 = scmp.ne.s32.totalorder %s19, %s22
    %p28 = scmp.eq.s32.totalorder %s9, 0
    %p29 = por %p27, %p28
    %p30 = scmp.ne.s32.totalorder %s19, %s22
    %p31 = scmp.eq.s32.totalorder %s14, 1
    %p32 = por %p30, %p31
    %p33 = scmp.ne.s32.totalorder %s22, %s23
    %p34 = scmp.eq.s32.totalorder %s14, 0
    %p35 = por %p33, %p34
    %p36 = scmp.ne.s32.totalorder %s22, %s23
    %p37 = scmp.eq.s32.totalorder %s15, 1
    %p38 = por %p36, %p37
    %p40 = scmp.ne.s32.totalorder %s23, %s39
    %p41 = scmp.eq.s32.totalorder %s15, 0
    %p42 = por %p40, %p41
    %s44 = sadd.s32 %s43, 1
    %p47 = scmp.eq.s32.totalorder %s9, 1
    %p48 = scmp.ne.s32.totalorder %s43, %s45
    %p49 = scmp.eq.s32.totalorder %s9, 0
    %p50 = por %p48, %p49
    %p51 = scmp.ne.s32.totalorder %s43, %s45
    %p52 = scmp.eq.s32.totalorder %s14, 1
    %p53 = por %p51, %p52
    %p54 = scmp.ne.s32.totalorder %s45, %s46
    %p55 = scmp.eq.s32.totalorder %s14, 0
    %p56 = por %p54, %p55
    %p57 = scmp.ne.s32.totalorder %s45, %s46
    %p58 = scmp.eq.s32.totalorder %s15, 1
    %p59 = por %p57, %p58
    %p61 = scmp.ne.s32.totalorder %s46, %s60
    %p62 = scmp.eq.s32.totalorder %s15, 0
    %p63 = por %p61, %p62
    %s65 = sadd.s32 %s64, 1
    %p68 = scmp.eq.s32.totalorder %s9, 1
    %p69 = scmp.ne.s32.totalorder %s64, %s66
    %p70 = scmp.eq.s32.totalorder %s9, 0
    %p71 = por %p69, %p70
    %p72 = scmp.ne.s32.totalorder %s64, %s66
    %p73 = scmp.eq.s32.totalorder %s14, 1
    %p74 = por %p72, %p73
    %p75 = scmp.ne.s32.totalorder %s66, %s67
    %p76 = scmp.eq.s32.totalorder %s14, 0
    %p77 = por %p75, %p76
    %p78 = scmp.ne.s32.totalorder %s66, %s67
    %p79 = scmp.eq.s32.totalorder %s15, 1
    %p80 = por %p78, %p79
    %p82 = scmp.ne.s32.totalorder %s67, %s81
    %p83 = scmp.eq.s32.totalorder %s15, 0
    %p84 = por %p82, %p83
    %s85 = ssub.s32 %s9, %s16
    %p86 = scmp.eq.s32.totalorder %s85, 0
    %s88 = sadd.s32 %s87, 1
    %s89 = scalar_select %p86, %s87, %s88
    %p92 = pneg %p86
    %p93 = scmp.eq.s32.totalorder %s9, 1
    %p94 = por %p92, %p93
    %p95 = scmp.ne.s32.totalorder %s87, %s90
    %p96 = scmp.eq.s32.totalorder %s9, 0
    %p97 = por %p95, %p96
    %p98 = scmp.ne.s32.totalorder %s87, %s90
    %p99 = scmp.eq.s32.totalorder %s14, 1
    %p100 = por %p98, %p99
    %p101 = scmp.ne.s32.totalorder %s90, %s91
    %p102 = scmp.eq.s32.totalorder %s14, 0
    %p103 = por %p101, %p102
    %p104 = scmp.ne.s32.totalorder %s90, %s91
    %p105 = scmp.eq.s32.totalorder %s15, 1
    %p106 = por %p104, %p105
    %p108 = scmp.ne.s32.totalorder %s91, %s107
    %p109 = scmp.eq.s32.totalorder %s15, 0
    %p110 = por %p108, %p109
    %p111 = scmp.le.s32.totalorder 1, %s9
    %p112 = scmp.lt.s32.totalorder %s9, 3
    %p113 = pnand %p111, %p112
    %p114 = pneg %p113
    // Predicated region
    $region9: #{down_pallas.5} parent=5 // pred_check
      _
    $region10: #{down_pallas.5} parent=5 // pred_check_branch
      %116 = sbr.rel (%p113) target = $region12
    $region11: #{down_pallas.5} parent=5 // pred_region
      %s117 = ssub.s32 %s9, 1
      // Predicated region
      $region13: #{down_pallas.5} parent=11 // pred_check
        %p118 = pneg %p56
      $region14: #{down_pallas.5} parent=11 // pred_check_branch
        %120 = sbr.rel (%p118) target = $region16
      $region15: #{down_pallas.5} parent=11 // pred_region
        _
      $region16: #{down_pallas.5} parent=11 // pred_fallthru
        _
      // Predicated region
      $region17: #{down_pallas.5} parent=11 // pred_check
        %p121 = pneg %p77
      $region18: #{down_pallas.5} parent=11 // pred_check_branch
        %123 = sbr.rel (%p121) target = $region20
      $region19: #{down_pallas.5} parent=11 // pred_region
        _
      $region20: #{down_pallas.5} parent=11 // pred_fallthru
        _
    $region12: #{down_pallas.5} parent=5 // pred_fallthru
      _
    %p124 = scmp.lt.s32.totalorder %s9, 2
    // Predicated region
    $region21: #{down_pallas.5} parent=5 // pred_check
      %p125 = pneg %p124
    $region22: #{down_pallas.5} parent=5 // pred_check_branch
      %127 = sbr.rel (%p125) target = $region24
    $region23: #{down_pallas.5} parent=5 // pred_region
      // Predicated region
      $region25: #{down_pallas.5} parent=23 // pred_check
        %p128 = pneg %p29
      $region26: #{down_pallas.5} parent=23 // pred_check_branch
        %130 = sbr.rel (%p128) target = $region28
      $region27: #{down_pallas.5} parent=23 // pred_region
        %p131 = scmp.lt.s32.totalorder %s9, 1
        %s132 = scalar_select %p131, %s9, 1
        %s133 = smul.addr %s132, 8
        %s134 = smul.addr %s133, 4
        %s135 = scalar_lea.vmem %s0, %s134
      $region28: #{down_pallas.5} parent=23 // pred_fallthru
        _
    $region24: #{down_pallas.5} parent=5 // pred_fallthru
      _
    %p136 = scmp.le.s32.totalorder 1, %s9
    %p137 = scmp.lt.s32.totalorder %s9, 3
    %p138 = pnand %p136, %p137
    %p139 = pneg %p138
    // Predicated region
    $region29: #{down_pallas.5} parent=5 // pred_check
      _
    $region30: #{down_pallas.5} parent=5 // pred_check_branch
      %141 = sbr.rel (%p138) target = $region32
    $region31: #{down_pallas.5} parent=5 // pred_region
      %s142 = ssub.s32 %s9, 1
      %p143 = scmp.lt.s32.totalorder %s14, 1
      %s144 = scalar_select %p143, %s14, 1
      %s145 = smul.addr %s144, 8
      %s146 = smul.addr %s145, 4
      %s147 = scalar_lea.vmem %s0, %s146
      %p148 = pneg %p35
      %p149 = pneg %p32
      %p150 = pneg %p56
      %p151 = pneg %p53
      %p152 = pneg %p77
      %p153 = pneg %p74
      %p154 = pneg %p103
      %p155 = pneg %p100
      %p156 = scmp.lt.s32.totalorder %s14, 1
      %s157 = scalar_select %p156, %s14, 1
      %s158 = smul.addr %s157, 8
      %s159 = scalar_lea.vmem %s3, %s158
      %p160 = scmp.lt.s32.totalorder %s14, 1
      %s161 = scalar_select %p160, %s14, 1
      %s162 = smul.addr %s161, 8
      %s163 = smul.addr %s162, 4
      %s164 = scalar_lea.vmem %s0, %s163
      %p165 = scmp.lt.s32.totalorder %s14, 1
      %s166 = scalar_select %p165, %s14, 1
      %s167 = smul.addr %s166, 8
      %s168 = scalar_lea.vmem %s3, %s167
      %v169 = vld [vmem:[%s164] sm:$0xf]
      %v170 = vld [vmem:[%s164 + $0x4] sm:$0xf]
      %v171 = vld [vmem:[%s164 + $0x8] sm:$0xf]
      %v172 = vld [vmem:[%s164 + $0xc] sm:$0xf]
      %v173 = vld [vmem:[%s164 + $0x10] sm:$0xf]
      %v174 = vld [vmem:[%s164 + $0x14] sm:$0xf]
      %v175 = vld [vmem:[%s164 + $0x18] sm:$0xf]
      %v176 = vld [vmem:[%s164 + $0x1c] sm:$0xf]
      %v177 = vunpack.c.l.bf16 %v169
      %v178 = vunpack.c.l.bf16 %v170
      %v179 = vunpack.c.l.bf16 %v171
      %v180 = vunpack.c.l.bf16 %v172
      %v181 = vunpack.c.l.bf16 %v173
      %v182 = vunpack.c.l.bf16 %v174
      %v183 = vunpack.c.l.bf16 %v175
      %v184 = vunpack.c.l.bf16 %v176
      %v185 = vld [vmem:[%s1] sm:$0x1]
      %v187 = vlaneseq
      %v188 = vshrl.u32 %v187, 7
      %v189 = vsub.s32 0, %v188
      %v190 = vrot.slane %v185, %v189
      %v192 = vmul.f32 %v177, %v190
      %v193 = vmul.f32 %v178, %v190
      %v194 = vmul.f32 %v179, %v190
      %v195 = vmul.f32 %v180, %v190
      %v196 = vmul.f32 %v181, %v190
      %v197 = vmul.f32 %v182, %v190
      %v198 = vmul.f32 %v183, %v190
      %v199 = vmul.f32 %v184, %v190
      %v200 = vld [vmem:[%s2] sm:$0x1]
      %v202 = vlaneseq
      %v203 = vshrl.u32 %v202, 7
      %v204 = vsub.s32 0, %v203
      %v205 = vrot.slane %v200, %v204
      %v207 = vadd.f32 %v192, %v205
      %v208 = vadd.f32 %v193, %v205
      %v209 = vadd.f32 %v194, %v205
      %v210 = vadd.f32 %v195, %v205
      %v211 = vadd.f32 %v196, %v205
      %v212 = vadd.f32 %v197, %v205
      %v213 = vadd.f32 %v198, %v205
      %v214 = vadd.f32 %v199, %v205
      %v215 = vmax.f32 %v207, 0.0
      %v216 = vmax.f32 %v208, 0.0
      %v217 = vmax.f32 %v209, 0.0
      %v218 = vmax.f32 %v210, 0.0
      %v219 = vmax.f32 %v211, 0.0
      %v220 = vmax.f32 %v212, 0.0
      %v221 = vmax.f32 %v213, 0.0
      %v222 = vmax.f32 %v214, 0.0
      %223 = vxpose.xlu0.b32.start [1/16] %v215, 128
      %224 = vxpose.xlu0.b32.cont [2/16] %v216, 128
      %225 = vxpose.xlu0.b32.cont [3/16] %v217, 128
      %226 = vxpose.xlu0.b32.cont [4/16] %v218, 128
      %227 = vxpose.xlu0.b32.cont [5/16] %v219, 128
      %228 = vxpose.xlu0.b32.cont [6/16] %v220, 128
      %229 = vxpose.xlu0.b32.cont [7/16] %v221, 128
      %230 = vxpose.xlu0.b32.cont [8/16] %v222, 128
      %231 = vxpose.xlu0.b32.cont [9/16] 0.0, 128
      %232 = vxpose.xlu0.b32.cont [10/16] 0.0, 128
      %233 = vxpose.xlu0.b32.cont [11/16] 0.0, 128
      %234 = vxpose.xlu0.b32.cont [12/16] 0.0, 128
      %235 = vxpose.xlu0.b32.cont [13/16] 0.0, 128
      %236 = vxpose.xlu0.b32.cont [14/16] 0.0, 128
      %237 = vxpose.xlu0.b32.cont [15/16] 0.0, 128
      %238 = vxpose.xlu0.b32.end [16/16] 0.0, 128
      %v239 = vpop.trf.xlu0
      %v240 = vpop.trf.xlu0
      %v241 = vpop.trf.xlu0
      %v242 = vpop.trf.xlu0
      %v243 = vpop.trf.xlu0
      %v244 = vpop.trf.xlu0
      %v245 = vpop.trf.xlu0
      %v246 = vpop.trf.xlu0
      %v247 = vpop.trf.xlu0
      %v248 = vpop.trf.xlu0
      %v249 = vpop.trf.xlu0
      %v250 = vpop.trf.xlu0
      %v251 = vpop.trf.xlu0
      %v252 = vpop.trf.xlu0
      %v253 = vpop.trf.xlu0
      %v254 = vpop.trf.xlu0
      %vm255 = vcmask 523264
      %256 = vst.msk [vmem:[%s168] sm:$0xff] %vm255, %v239
      %p257 = scmp.lt.s32.totalorder %s14, 1
      %s258 = scalar_select %p257, %s14, 1
      %s259 = smul.addr %s258, 8
      %s260 = scalar_lea.vmem %s3, %s259
      // Predicated region
      $region33: #{down_pallas.5} parent=31 // pred_check
        %p261 = pneg %p100
      $region34: #{down_pallas.5} parent=31 // pred_check_branch
        %263 = sbr.rel (%p261) target = $region36
      $region35: #{down_pallas.5} parent=31 // pred_region
        _
      $region36: #{down_pallas.5} parent=31 // pred_fallthru
        _
    $region32: #{down_pallas.5} parent=5 // pred_fallthru
      _
    %p264 = scmp.le.s32.totalorder 2, %s9
    // Predicated region
    $region37: #{down_pallas.5} parent=5 // pred_check
      %p265 = pneg %p264
    $region38: #{down_pallas.5} parent=5 // pred_check_branch
      %267 = sbr.rel (%p265) target = $region40
    $region39: #{down_pallas.5} parent=5 // pred_region
      %s268 = ssub.s32 %s9, 2
      // Predicated region
      $region41: #{down_pallas.5} parent=39 // pred_check
        %p269 = pneg %p106
      $region42: #{down_pallas.5} parent=39 // pred_check_branch
        %271 = sbr.rel (%p269) target = $region44
      $region43: #{down_pallas.5} parent=39 // pred_region
        %p272 = scmp.lt.s32.totalorder %s15, 1
        %s273 = scalar_select %p272, %s15, 1
        %s274 = smul.addr %s273, 8
        %s275 = scalar_lea.vmem %s3, %s274
      $region44: #{down_pallas.5} parent=39 // pred_fallthru
        _
    $region40: #{down_pallas.5} parent=5 // pred_fallthru
      _
  $region6: #{down_pallas.5} parent=0 // loop_footer
    %s13 = sadd.s32 1, %s9
  $region7: #{down_pallas.5} parent=0 // loop_footer_branch
    %8 = sbr.rel target = $region3
  $region8: #{down_pallas.5} parent=0 // loop_exit
    _

// kernel: down_pallas.4
$region0: #{down_pallas.4}
  #allocation0 [shape = 'u32[]', space=smem, size = 0x4, offset = 0x4, fixed_abs, tag = 'smem constant byte address 0x4 - core index']
  #allocation1 [shape = 'u32[144,128]{1,0:T(1,128)}', space=vmem, size = 0x12000, scoped, tag = 'internal scratch']
  %s0 = inlined_call_operand.vmem [shape: bf16[2,64,8], index: 0, kind: input, shape index: {}]
  %s1 = inlined_call_operand.vmem [shape: f32[1,8], index: 1, kind: input, shape index: {}]
  %s2 = inlined_call_operand.vmem [shape: f32[1,8], index: 2, kind: input, shape index: {}]
  %s3 = inlined_call_operand.vmem [shape: bf16[3,24,8], index: 3, kind: input, shape index: {}]
  %s4 = inlined_call_operand.vmem [shape: bf16[2,64,8], index: 4, kind: output, shape index: {0}]
  %s5 = inlined_call_operand.vmem [shape: f32[2,1,16], index: 5, kind: output, shape index: {1}]
  %6 = xla_tuple %s4, %s5
  %s7 = sld [smem:[#allocation0]]
  $region57: #{down_pallas.4} parent=0
    _
  %s9 = ssub.s32 1, %s7
  %s10 = scalar_select 0, %s9, %s7
  loop: start=0, step=1, limit=4
  $region2: #{down_pallas.4} parent=0 // loop_pre_header
    _
  $region3: #{down_pallas.4} parent=0 // loop_header
    %s12 = sphi 0, %s16
    %p13 = scmp.ge.s32.totalorder %s12, 4
    %s22 = sphi 0, %s24
    %s25 = sphi 0, %s22
    %s26 = sphi 0, %s25
    %s42 = sphi 0, %s26
    %s46 = sphi 0, %s46
    %s48 = sphi 0, %s46
    %s49 = sphi 0, %s48
    %s63 = sphi 0, %s49
    %s67 = sphi 0, %s67
    %s69 = sphi 0, %s67
    %s70 = sphi 0, %s69
    %s84 = sphi 0, %s70
    %s88 = sphi 0, %s88
    %s90 = sphi 0, %s88
    %s91 = sphi 0, %s90
    %s105 = sphi 0, %s91
    %s111 = sphi 0, %s113
    %s114 = sphi 0, %s111
    %s115 = sphi 0, %s114
    %s131 = sphi 0, %s115
    %s137 = sphi 0, %s139
    %s140 = sphi 0, %s137
    %s141 = sphi 0, %s140
    %s157 = sphi 0, %s141
  $region4: #{down_pallas.4} parent=0 // loop_header_branch
    %15 = sbr.rel (%p13) target = $region8
  $region5: #{down_pallas.4} parent=0 // loop_body
    %s17 = ssub.s32 %s12, 1
    %s18 = ssub.s32 %s12, 2
    %s19 = sadd.s32 %s12, 1
    %s20 = ssub.s32 %s12, %s19
    %p21 = scmp.eq.s32.totalorder %s20, 0
    %s23 = sadd.s32 %s22, 1
    %s24 = scalar_select %p21, %s22, %s23
    %p27 = pneg %p21
    %p28 = scmp.eq.s32.totalorder %s12, 1
    %p29 = por %p27, %p28
    %p30 = scmp.ne.s32.totalorder %s22, %s25
    %p31 = scmp.eq.s32.totalorder %s12, 0
    %p32 = por %p30, %p31
    %p33 = scmp.ne.s32.totalorder %s22, %s25
    %p34 = scmp.eq.s32.totalorder %s17, 1
    %p35 = por %p33, %p34
    %p36 = scmp.ne.s32.totalorder %s25, %s26
    %p37 = scmp.eq.s32.totalorder %s17, 0
    %p38 = por %p36, %p37
    %p39 = scmp.ne.s32.totalorder %s25, %s26
    %p40 = scmp.eq.s32.totalorder %s18, 1
    %p41 = por %p39, %p40
    %p43 = scmp.ne.s32.totalorder %s26, %s42
    %p44 = scmp.eq.s32.totalorder %s18, 0
    %p45 = por %p43, %p44
    %s47 = sadd.s32 %s46, 1
    %p50 = scmp.eq.s32.totalorder %s12, 1
    %p51 = scmp.ne.s32.totalorder %s46, %s48
    %p52 = scmp.eq.s32.totalorder %s12, 0
    %p53 = por %p51, %p52
    %p54 = scmp.ne.s32.totalorder %s46, %s48
    %p55 = scmp.eq.s32.totalorder %s17, 1
    %p56 = por %p54, %p55
    %p57 = scmp.ne.s32.totalorder %s48, %s49
    %p58 = scmp.eq.s32.totalorder %s17, 0
    %p59 = por %p57, %p58
    %p60 = scmp.ne.s32.totalorder %s48, %s49
    %p61 = scmp.eq.s32.totalorder %s18, 1
    %p62 = por %p60, %p61
    %p64 = scmp.ne.s32.totalorder %s49, %s63
    %p65 = scmp.eq.s32.totalorder %s18, 0
    %p66 = por %p64, %p65
    %s68 = sadd.s32 %s67, 1
    %p71 = scmp.eq.s32.totalorder %s12, 1
    %p72 = scmp.ne.s32.totalorder %s67, %s69
    %p73 = scmp.eq.s32.totalorder %s12, 0
    %p74 = por %p72, %p73
    %p75 = scmp.ne.s32.totalorder %s67, %s69
    %p76 = scmp.eq.s32.totalorder %s17, 1
    %p77 = por %p75, %p76
    %p78 = scmp.ne.s32.totalorder %s69, %s70
    %p79 = scmp.eq.s32.totalorder %s17, 0
    %p80 = por %p78, %p79
    %p81 = scmp.ne.s32.totalorder %s69, %s70
    %p82 = scmp.eq.s32.totalorder %s18, 1
    %p83 = por %p81, %p82
    %p85 = scmp.ne.s32.totalorder %s70, %s84
    %p86 = scmp.eq.s32.totalorder %s18, 0
    %p87 = por %p85, %p86
    %s89 = sadd.s32 %s88, 1
    %p92 = scmp.eq.s32.totalorder %s12, 1
    %p93 = scmp.ne.s32.totalorder %s88, %s90
    %p94 = scmp.eq.s32.totalorder %s12, 0
    %p95 = por %p93, %p94
    %p96 = scmp.ne.s32.totalorder %s88, %s90
    %p97 = scmp.eq.s32.totalorder %s17, 1
    %p98 = por %p96, %p97
    %p99 = scmp.ne.s32.totalorder %s90, %s91
    %p100 = scmp.eq.s32.totalorder %s17, 0
    %p101 = por %p99, %p100
    %p102 = scmp.ne.s32.totalorder %s90, %s91
    %p103 = scmp.eq.s32.totalorder %s18, 1
    %p104 = por %p102, %p103
    %p106 = scmp.ne.s32.totalorder %s91, %s105
    %p107 = scmp.eq.s32.totalorder %s18, 0
    %p108 = por %p106, %p107
    %s109 = ssub.s32 %s12, %s19
    %p110 = scmp.eq.s32.totalorder %s109, 0
    %s112 = sadd.s32 %s111, 1
    %s113 = scalar_select %p110, %s111, %s112
    %p116 = pneg %p110
    %p117 = scmp.eq.s32.totalorder %s12, 1
    %p118 = por %p116, %p117
    %p119 = scmp.ne.s32.totalorder %s111, %s114
    %p120 = scmp.eq.s32.totalorder %s12, 0
    %p121 = por %p119, %p120
    %p122 = scmp.ne.s32.totalorder %s111, %s114
    %p123 = scmp.eq.s32.totalorder %s17, 1
    %p124 = por %p122, %p123
    %p125 = scmp.ne.s32.totalorder %s114, %s115
    %p126 = scmp.eq.s32.totalorder %s17, 0
    %p127 = por %p125, %p126
    %p128 = scmp.ne.s32.totalorder %s114, %s115
    %p129 = scmp.eq.s32.totalorder %s18, 1
    %p130 = por %p128, %p129
    %p132 = scmp.ne.s32.totalorder %s115, %s131
    %p133 = scmp.eq.s32.totalorder %s18, 0
    %p134 = por %p132, %p133
    %s135 = ssub.s32 %s12, %s19
    %p136 = scmp.eq.s32.totalorder %s135, 0
    %s138 = sadd.s32 %s137, 1
    %s139 = scalar_select %p136, %s137, %s138
    %p142 = pneg %p136
    %p143 = scmp.eq.s32.totalorder %s12, 1
    %p144 = por %p142, %p143
    %p145 = scmp.ne.s32.totalorder %s137, %s140
    %p146 = scmp.eq.s32.totalorder %s12, 0
    %p147 = por %p145, %p146
    %p148 = scmp.ne.s32.totalorder %s137, %s140
    %p149 = scmp.eq.s32.totalorder %s17, 1
    %p150 = por %p148, %p149
    %p151 = scmp.ne.s32.totalorder %s140, %s141
    %p152 = scmp.eq.s32.totalorder %s17, 0
    %p153 = por %p151, %p152
    %p154 = scmp.ne.s32.totalorder %s140, %s141
    %p155 = scmp.eq.s32.totalorder %s18, 1
    %p156 = por %p154, %p155
    %p158 = scmp.ne.s32.totalorder %s141, %s157
    %p159 = scmp.eq.s32.totalorder %s18, 0
    %p160 = por %p158, %p159
    %p161 = scmp.le.s32.totalorder 1, %s12
    %p162 = scmp.lt.s32.totalorder %s12, 3
    %p163 = pnand %p161, %p162
    %p164 = pneg %p163
    // Predicated region
    $region9: #{down_pallas.4} parent=5 // pred_check
      _
    $region10: #{down_pallas.4} parent=5 // pred_check_branch
      %166 = sbr.rel (%p163) target = $region12
    $region11: #{down_pallas.4} parent=5 // pred_region
      %s167 = ssub.s32 %s12, 1
      // Predicated region
      $region13: #{down_pallas.4} parent=11 // pred_check
        %p168 = pneg %p59
      $region14: #{down_pallas.4} parent=11 // pred_check_branch
        %170 = sbr.rel (%p168) target = $region16
      $region15: #{down_pallas.4} parent=11 // pred_region
        _
      $region16: #{down_pallas.4} parent=11 // pred_fallthru
        _
      // Predicated region
      $region17: #{down_pallas.4} parent=11 // pred_check
        %p171 = pneg %p80
      $region18: #{down_pallas.4} parent=11 // pred_check_branch
        %173 = sbr.rel (%p171) target = $region20
      $region19: #{down_pallas.4} parent=11 // pred_region
        _
      $region20: #{down_pallas.4} parent=11 // pred_fallthru
        _
      // Predicated region
      $region21: #{down_pallas.4} parent=11 // pred_check
        %p174 = pneg %p101
      $region22: #{down_pallas.4} parent=11 // pred_check_branch
        %176 = sbr.rel (%p174) target = $region24
      $region23: #{down_pallas.4} parent=11 // pred_region
        _
      $region24: #{down_pallas.4} parent=11 // pred_fallthru
        _
    $region12: #{down_pallas.4} parent=5 // pred_fallthru
      _
    %p177 = scmp.lt.s32.totalorder %s12, 2
    // Predicated region
    $region25: #{down_pallas.4} parent=5 // pred_check
      %p178 = pneg %p177
    $region26: #{down_pallas.4} parent=5 // pred_check_branch
      %180 = sbr.rel (%p178) target = $region28
    $region27: #{down_pallas.4} parent=5 // pred_region
      // Predicated region
      $region29: #{down_pallas.4} parent=27 // pred_check
        %p181 = pneg %p32
      $region30: #{down_pallas.4} parent=27 // pred_check_branch
        %183 = sbr.rel (%p181) target = $region32
      $region31: #{down_pallas.4} parent=27 // pred_region
        %p184 = scmp.lt.s32.totalorder %s12, 1
        %s185 = scalar_select %p184, %s12, 1
        %s186 = smul.addr %s185, 8
        %s187 = smul.addr %s186, 4
        %s188 = scalar_lea.vmem %s0, %s187
      $region32: #{down_pallas.4} parent=27 // pred_fallthru
        _
    $region28: #{down_pallas.4} parent=5 // pred_fallthru
      _
    %p189 = scmp.le.s32.totalorder 1, %s12
    %p190 = scmp.lt.s32.totalorder %s12, 3
    %p191 = pnand %p189, %p190
    %p192 = pneg %p191
    // Predicated region
    $region33: #{down_pallas.4} parent=5 // pred_check
      _
    $region34: #{down_pallas.4} parent=5 // pred_check_branch
      %194 = sbr.rel (%p191) target = $region36
    $region35: #{down_pallas.4} parent=5 // pred_region
      %s195 = ssub.s32 %s12, 1
      %p196 = scmp.lt.s32.totalorder %s17, 1
      %s197 = scalar_select %p196, %s17, 1
      %s198 = smul.addr %s197, 8
      %s199 = smul.addr %s198, 4
      %s200 = scalar_lea.vmem %s0, %s199
      %p201 = pneg %p38
      %p202 = pneg %p35
      %p203 = pneg %p59
      %p204 = pneg %p56
      %p205 = pneg %p80
      %p206 = pneg %p77
      %p207 = pneg %p101
      %p208 = pneg %p98
      %p209 = pneg %p127
      %p210 = pneg %p124
      %p211 = scmp.lt.s32.totalorder %s17, 1
      %s212 = scalar_select %p211, %s17, 1
      %s213 = smul.addr %s212, 8
      %s214 = smul.addr %s213, 4
      %s215 = scalar_lea.vmem %s4, %s214
      %p216 = pneg %p153
      %p217 = pneg %p150
      %p218 = scmp.lt.s32.totalorder %s17, 1
      %s219 = scalar_select %p218, %s17, 1
      %s220 = scalar_lea.vmem %s5, %s219
      %p221 = scmp.lt.s32.totalorder %s17, 1
      %s222 = scalar_select %p221, %s17, 1
      %s223 = smul.addr %s222, 8
      %s224 = smul.addr %s223, 4
      %s225 = scalar_lea.vmem %s0, %s224
      %p226 = scmp.lt.s32.totalorder %s17, 1
      %s227 = scalar_select %p226, %s17, 1
      %s228 = smul.addr %s227, 8
      %s229 = smul.addr %s228, 4
      %s230 = scalar_lea.vmem %s4, %s229
      %p231 = scmp.lt.s32.totalorder %s17, 1
      %s232 = scalar_select %p231, %s17, 1
      %s233 = scalar_lea.vmem %s5, %s232
      %v235 = vld [vmem:[%s225] sm:$0xf]
      %v236 = vld [vmem:[%s225 + $0x4] sm:$0xf]
      %v237 = vld [vmem:[%s225 + $0x8] sm:$0xf]
      %v238 = vld [vmem:[%s225 + $0xc] sm:$0xf]
      %v239 = vld [vmem:[%s225 + $0x10] sm:$0xf]
      %v240 = vld [vmem:[%s225 + $0x14] sm:$0xf]
      %v241 = vld [vmem:[%s225 + $0x18] sm:$0xf]
      %v242 = vld [vmem:[%s225 + $0x1c] sm:$0xf]
      %v243 = vunpack.c.l.bf16 %v235
      %v244 = vunpack.c.l.bf16 %v236
      %v245 = vunpack.c.l.bf16 %v237
      %v246 = vunpack.c.l.bf16 %v238
      %v247 = vunpack.c.l.bf16 %v239
      %v248 = vunpack.c.l.bf16 %v240
      %v249 = vunpack.c.l.bf16 %v241
      %v250 = vunpack.c.l.bf16 %v242
      %v251 = vld [vmem:[%s1] sm:$0x1]
      %v253 = vlaneseq
      %v254 = vshrl.u32 %v253, 7
      %v255 = vsub.s32 0, %v254
      %v256 = vrot.slane %v251, %v255
      %v258 = vmul.f32 %v243, %v256
      %v259 = vmul.f32 %v244, %v256
      %v260 = vmul.f32 %v245, %v256
      %v261 = vmul.f32 %v246, %v256
      %v262 = vmul.f32 %v247, %v256
      %v263 = vmul.f32 %v248, %v256
      %v264 = vmul.f32 %v249, %v256
      %v265 = vmul.f32 %v250, %v256
      %v266 = vld [vmem:[%s2] sm:$0x1]
      %v268 = vlaneseq
      %v269 = vshrl.u32 %v268, 7
      %v270 = vsub.s32 0, %v269
      %v271 = vrot.slane %v266, %v270
      %v273 = vadd.f32 %v258, %v271
      %v274 = vadd.f32 %v259, %v271
      %v275 = vadd.f32 %v260, %v271
      %v276 = vadd.f32 %v261, %v271
      %v277 = vadd.f32 %v262, %v271
      %v278 = vadd.f32 %v263, %v271
      %v279 = vadd.f32 %v264, %v271
      %v280 = vadd.f32 %v265, %v271
      %v281 = vmax.f32 %v273, 0.0
      %v282 = vmax.f32 %v274, 0.0
      %v283 = vmax.f32 %v275, 0.0
      %v284 = vmax.f32 %v276, 0.0
      %v285 = vmax.f32 %v277, 0.0
      %v286 = vmax.f32 %v278, 0.0
      %v287 = vmax.f32 %v279, 0.0
      %v288 = vmax.f32 %v280, 0.0
      %v289 = vpack.c.bf16 %v282, %v281
      %v290 = vpack.c.bf16 %v284, %v283
      %v291 = vpack.c.bf16 %v286, %v285
      %v292 = vpack.c.bf16 %v288, %v287
      %v297 = vunpack.c.l.b16 %v289
      %v298 = vunpack.c.h.b16 %v289
      %v299 = vunpack.c.l.b16 %v290
      %v300 = vunpack.c.h.b16 %v290
      %v301 = vunpack.c.l.b16 %v291
      %v302 = vunpack.c.h.b16 %v291
      %v303 = vunpack.c.l.b16 %v292
      %v304 = vunpack.c.h.b16 %v292
      %v305 = vpack.c.b16 %v297, %v297
      %v306 = vpack.c.b16 %v298, %v298
      %v307 = vpack.c.b16 %v299, %v299
      %v308 = vpack.c.b16 %v300, %v300
      %v309 = vpack.c.b16 %v301, %v301
      %v310 = vpack.c.b16 %v302, %v302
      %v311 = vpack.c.b16 %v303, %v303
      %v312 = vpack.c.b16 %v304, %v304
      %v314 = vshrl.u32 0, 16
      %v316 = vrot.slane %v314, 7
      %v317 = vshll.u32 0, 16
      %v319 = vor.u32 %v316, %v317
      %v321 = vshrl.u32 %v305, 16
      %v323 = vrot.slane %v321, 7
      %v324 = vshll.u32 %v305, 16
      %v326 = vor.u32 %v323, %v324
      %v328 = vshrl.u32 %v306, 16
      %v330 = vrot.slane %v328, 7
      %v331 = vshll.u32 %v306, 16
      %v333 = vor.u32 %v330, %v331
      %v335 = vshrl.u32 %v307, 16
      %v337 = vrot.slane %v335, 7
      %v338 = vshll.u32 %v307, 16
      %v340 = vor.u32 %v337, %v338
      %v342 = vshrl.u32 %v308, 16
      %v344 = vrot.slane %v342, 7
      %v345 = vshll.u32 %v308, 16
      %v347 = vor.u32 %v344, %v345
      %v349 = vshrl.u32 %v309, 16
      %v351 = vrot.slane %v349, 7
      %v352 = vshll.u32 %v309, 16
      %v354 = vor.u32 %v351, %v352
      %v356 = vshrl.u32 %v310, 16
      %v358 = vrot.slane %v356, 7
      %v359 = vshll.u32 %v310, 16
      %v361 = vor.u32 %v358, %v359
      %v363 = vshrl.u32 %v311, 16
      %v365 = vrot.slane %v363, 7
      %v366 = vshll.u32 %v311, 16
      %v368 = vor.u32 %v365, %v366
      %v370 = vshrl.u32 %v312, 16
      %v372 = vrot.slane %v370, 7
      %v373 = vshll.u32 %v312, 16
      %v375 = vor.u32 %v372, %v373
      %vm385 = vcmask 1040384
      %vm386 = vsmask.f32 256
      %vm387 = vmand %vm385, %vm386
      %v388 = vsel %vm387, 0, %v319
      %v389 = vsel %vm387, 0, %v326
      %v390 = vsel %vm387, 0, %v333
      %v391 = vsel %vm387, 0, %v340
      %v392 = vsel %vm387, 0, %v347
      %v393 = vsel %vm387, 0, %v354
      %v394 = vsel %vm387, 0, %v361
      %v395 = vsel %vm387, 0, %v368
      %v396 = vsel %vm387, 0, %v375
      %vm397 = vcmask 1044480
      %vm398 = vsmask.f32 4352
      %vm399 = vmand %vm397, %vm398
      %v400 = vsel %vm399, %v388, 0
      %v401 = vsel %vm399, %v389, 0
      %v402 = vsel %vm399, %v390, 0
      %v403 = vsel %vm399, %v391, 0
      %v404 = vsel %vm399, %v392, 0
      %v405 = vsel %vm399, %v393, 0
      %v406 = vsel %vm399, %v394, 0
      %v407 = vsel %vm399, %v395, 0
      %v408 = vsel %vm399, %v396, 0
      %v410 = vshrl.u32 %v400, 16
      %v412 = vshll.u32 %v400, 16
      %v414 = vrot.slane %v412, 1
      %v415 = vor.u32 %v410, %v414
      %v417 = vshrl.u32 %v401, 16
      %v419 = vshll.u32 %v401, 16
      %v421 = vrot.slane %v419, 1
      %v422 = vor.u32 %v417, %v421
      %v424 = vshrl.u32 %v402, 16
      %v426 = vshll.u32 %v402, 16
      %v428 = vrot.slane %v426, 1
      %v429 = vor.u32 %v424, %v428
      %v431 = vshrl.u32 %v403, 16
      %v433 = vshll.u32 %v403, 16
      %v435 = vrot.slane %v433, 1
      %v436 = vor.u32 %v431, %v435
      %v438 = vshrl.u32 %v404, 16
      %v440 = vshll.u32 %v404, 16
      %v442 = vrot.slane %v440, 1
      %v443 = vor.u32 %v438, %v442
      %v445 = vshrl.u32 %v405, 16
      %v447 = vshll.u32 %v405, 16
      %v449 = vrot.slane %v447, 1
      %v450 = vor.u32 %v445, %v449
      %v452 = vshrl.u32 %v406, 16
      %v454 = vshll.u32 %v406, 16
      %v456 = vrot.slane %v454, 1
      %v457 = vor.u32 %v452, %v456
      %v459 = vshrl.u32 %v407, 16
      %v461 = vshll.u32 %v407, 16
      %v463 = vrot.slane %v461, 1
      %v464 = vor.u32 %v459, %v463
      %465 = vrot.lane.b32.xlu0 %v415, 8
      %v466 = vpop.permute.xlu0 %465
      %467 = vrot.lane.b32.xlu0 %v422, 8
      %v468 = vpop.permute.xlu0 %467
      %469 = vrot.lane.b32.xlu0 %v429, 8
      %v470 = vpop.permute.xlu0 %469
      %471 = vrot.lane.b32.xlu0 %v436, 8
      %v472 = vpop.permute.xlu0 %471
      %473 = vrot.lane.b32.xlu0 %v443, 8
      %v474 = vpop.permute.xlu0 %473
      %475 = vrot.lane.b32.xlu0 %v450, 8
      %v476 = vpop.permute.xlu0 %475
      %477 = vrot.lane.b32.xlu0 %v457, 8
      %v478 = vpop.permute.xlu0 %477
      %479 = vrot.lane.b32.xlu0 %v464, 8
      %v480 = vpop.permute.xlu0 %479
      %v489 = vrot.slane %v400, 1
      %v490 = vrot.slane %v401, 1
      %v491 = vrot.slane %v402, 1
      %v492 = vrot.slane %v403, 1
      %v493 = vrot.slane %v404, 1
      %v494 = vrot.slane %v405, 1
      %v495 = vrot.slane %v406, 1
      %v496 = vrot.slane %v407, 1
      %497 = vrot.lane.b32.xlu0 %v489, 16
      %v498 = vpop.permute.xlu0 %497
      %499 = vrot.lane.b32.xlu0 %v490, 16
      %v500 = vpop.permute.xlu0 %499
      %501 = vrot.lane.b32.xlu0 %v491, 16
      %v502 = vpop.permute.xlu0 %501
      %503 = vrot.lane.b32.xlu0 %v492, 16
      %v504 = vpop.permute.xlu0 %503
      %505 = vrot.lane.b32.xlu0 %v493, 16
      %v506 = vpop.permute.xlu0 %505
      %507 = vrot.lane.b32.xlu0 %v494, 16
      %v508 = vpop.permute.xlu0 %507
      %509 = vrot.lane.b32.xlu0 %v495, 16
      %v510 = vpop.permute.xlu0 %509
      %511 = vrot.lane.b32.xlu0 %v496, 16
      %v512 = vpop.permute.xlu0 %511
      %vm513 = vcmask 64512
      %v515 = vsel %vm513, %v400, %v466
      %v517 = vsel %vm513, %v401, %v468
      %v519 = vsel %vm513, %v402, %v470
      %v521 = vsel %vm513, %v403, %v472
      %v523 = vsel %vm513, %v404, %v474
      %v525 = vsel %vm513, %v405, %v476
      %v527 = vsel %vm513, %v406, %v478
      %v529 = vsel %vm513, %v407, %v480
      %vm530 = vcmask 130048
      %v532 = vsel %vm530, %v515, %v498
      %v534 = vsel %vm530, %v517, %v500
      %v536 = vsel %vm530, %v519, %v502
      %v538 = vsel %vm530, %v521, %v504
      %v540 = vsel %vm530, %v523, %v506
      %v542 = vsel %vm530, %v525, %v508
      %v544 = vsel %vm530, %v527, %v510
      %v546 = vsel %vm530, %v529, %v512
      %v547 = vld [vmem:[%s3] sm:$0xf]
      %v548 = vld [vmem:[%s3 + $0x4] sm:$0xf]
      %v549 = vld [vmem:[%s3 + $0x8] sm:$0xf]
      %v551 = vshrl.u32 %v408, 16
      %v553 = vshll.u32 %v408, 16
      %v555 = vrot.slane %v553, 1
      %v556 = vor.u32 %v551, %v555
      %557 = vrot.lane.b32.xlu0 %v556, 8
      %v558 = vpop.permute.xlu0 %557
      %v560 = vrot.slane %v408, 1
      %561 = vrot.lane.b32.xlu0 %v560, 16
      %v562 = vpop.permute.xlu0 %561
      %v564 = vsel %vm513, %v408, %v558
      %v566 = vsel %vm530, %v564, %v562
      %s567 = scalar_lea.vmem %s3, 12
      %v568 = vld [vmem:[%s567] sm:$0xf]
      %v569 = vld [vmem:[%s567 + $0x4] sm:$0xf]
      %v570 = vld [vmem:[%s567 + $0x8] sm:$0xf]
      %v579 = vunpack.c.l.b16 %v534
      %v580 = vunpack.c.l.b16 %v536
      %v581 = vunpack.c.l.b16 %v538
      %v582 = vunpack.c.l.b16 %v540
      %v583 = vunpack.c.l.b16 %v542
      %v584 = vunpack.c.l.b16 %v544
      %v585 = vunpack.c.l.b16 %v546
      %v586 = vunpack.c.l.b16 %v566
      %v587 = vpack.c.b16 %v580, %v579
      %v588 = vpack.c.b16 %v582, %v581
      %v589 = vpack.c.b16 %v584, %v583
      %v590 = vpack.c.b16 %v586, %v585
      %v594 = vunpack.c.l.b16 %v568
      %v595 = vunpack.c.l.b16 %v569
      %v596 = vunpack.c.l.b16 %v570
      %v597 = vpack.c.b16 %v595, %v594
      %v598 = vpack.c.b16 %v596, %v596
      %vm600 = vcmask 195584
      %v602 = vsel %vm600, %v587, 0
      %v605 = vsel %vm600, %v588, 0
      %v608 = vsel %vm600, %v589, 0
      %v611 = vsel %vm600, %v590, 0
      %vm613 = vcmask 1043456
      %v615 = vsel %vm613, %v598, 0
      %617 = vmatprep.subr.bf16.mxu0 0
      %618 = vmatpush1.bf16.msra.mxu0 %v597
      %619 = vmatprep.subr.bf16.mxu0 0
      %620 = vmatpush1.bf16.msra.mxu0 %v615
      %621 = vmatprep.subr.bf16.mxu0 0
      %622 = vmatpush1.bf16.msra.mxu0 0
      %623 = vmatprep.subr.bf16.mxu0 0
      %624 = vmatpush1.bf16.msra.mxu0 0
      %625 = vmatprep.subr.bf16.mxu0 0
      %626 = vmatpush1.bf16.msra.mxu0 0
      %627 = vmatprep.subr.bf16.mxu0 0
      %628 = vmatpush1.bf16.msra.mxu0 0
      %629 = vmatprep.subr.bf16.mxu0 0
      %630 = vmatpush1.bf16.msra.mxu0 0
      %631 = vmatprep.subr.bf16.mxu0 0
      %632 = vmatpush1.bf16.msra.mxu0 0
      %633 = vmatprep.subr.bf16.mxu0 0
      %634 = vmatpush1.bf16.msra.mxu0 0
      %635 = vmatprep.subr.bf16.mxu0 0
      %636 = vmatpush1.bf16.msra.mxu0 0
      %637 = vmatprep.subr.bf16.mxu0 0
      %638 = vmatpush1.bf16.msra.mxu0 0
      %639 = vmatprep.subr.bf16.mxu0 0
      %640 = vmatpush1.bf16.msra.mxu0 0
      %641 = vmatprep.subr.bf16.mxu0 0
      %642 = vmatpush1.bf16.msra.mxu0 0
      %643 = vmatprep.subr.bf16.mxu0 0
      %644 = vmatpush1.bf16.msra.mxu0 0
      %645 = vmatprep.subr.bf16.mxu0 0
      %646 = vmatpush1.bf16.msra.mxu0 0
      %647 = vmatprep.subr.bf16.mxu0 0
      %648 = vmatpush1.bf16.msra.mxu0 0
      %649 = vmatprep.mubr.bf16.mxu0 0
      %650 = vmatmul.mubr.bf16.gmra.mrb[0].mxu0 %v602
      %v651 = vpop.f32.mrb[0].mxu0
      %v652 = vadd.f32 0.0, %v651
      %v653 = vpop.f32.mrb[0].mxu0
      %v654 = vpop.f32.mrb[0].mxu0
      %v655 = vadd.f32 0.0, %v654
      %v656 = vpop.f32.mrb[0].mxu0
      %657 = vmatprep.mubr.bf16.mxu0 0
      %658 = vmatmul.mubr.bf16.gmra.mrb[0].mxu0 %v605
      %v659 = vpop.f32.mrb[0].mxu0
      %v660 = vadd.f32 0.0, %v659
      %v661 = vpop.f32.mrb[0].mxu0
      %v662 = vpop.f32.mrb[0].mxu0
      %v663 = vadd.f32 0.0, %v662
      %v664 = vpop.f32.mrb[0].mxu0
      %665 = vmatprep.mubr.bf16.mxu0 0
      %666 = vmatmul.mubr.bf16.gmra.mrb[0].mxu0 %v608
      %v667 = vpop.f32.mrb[0].mxu0
      %v668 = vadd.f32 0.0, %v667
      %v669 = vpop.f32.mrb[0].mxu0
      %v670 = vpop.f32.mrb[0].mxu0
      %v671 = vadd.f32 0.0, %v670
      %v672 = vpop.f32.mrb[0].mxu0
      %673 = vmatprep.mubr.bf16.mxu0 0
      %674 = vmatmul.mubr.bf16.gmra.mrb[0].mxu0 %v611
      %v675 = vpop.f32.mrb[0].mxu0
      %v676 = vadd.f32 0.0, %v675
      %v677 = vpop.f32.mrb[0].mxu0
      %v678 = vpop.f32.mrb[0].mxu0
      %v679 = vadd.f32 0.0, %v678
      %v680 = vpop.f32.mrb[0].mxu0
      %681 = vdwg.mxu0
      %v683 = vunpack.c.l.b16 %v532
      %v684 = vpack.c.b16 %v579, %v683
      %v685 = vpack.c.b16 %v581, %v580
      %v686 = vpack.c.b16 %v583, %v582
      %v687 = vpack.c.b16 %v585, %v584
      %v691 = vunpack.c.l.b16 %v547
      %v692 = vunpack.c.l.b16 %v548
      %v693 = vunpack.c.l.b16 %v549
      %v694 = vpack.c.b16 %v692, %v691
      %v695 = vpack.c.b16 %v693, %v693
      %v698 = vsel %vm600, %v684, 0
      %v701 = vsel %vm600, %v685, 0
      %v704 = vsel %vm600, %v686, 0
      %v707 = vsel %vm600, %v687, 0
      %v710 = vsel %vm613, %v695, 0
      %712 = vmatprep.subr.bf16.mxu0 0
      %713 = vmatpush1.bf16.msra.mxu0 %v694
      %714 = vmatprep.subr.bf16.mxu0 0
      %715 = vmatpush1.bf16.msra.mxu0 %v710
      %716 = vmatprep.subr.bf16.mxu0 0
      %717 = vmatpush1.bf16.msra.mxu0 0
      %718 = vmatprep.subr.bf16.mxu0 0
      %719 = vmatpush1.bf16.msra.mxu0 0
      %720 = vmatprep.subr.bf16.mxu0 0
      %721 = vmatpush1.bf16.msra.mxu0 0
      %722 = vmatprep.subr.bf16.mxu0 0
      %723 = vmatpush1.bf16.msra.mxu0 0
      %724 = vmatprep.subr.bf16.mxu0 0
      %725 = vmatpush1.bf16.msra.mxu0 0
      %726 = vmatprep.subr.bf16.mxu0 0
      %727 = vmatpush1.bf16.msra.mxu0 0
      %728 = vmatprep.subr.bf16.mxu0 0
      %729 = vmatpush1.bf16.msra.mxu0 0
      %730 = vmatprep.subr.bf16.mxu0 0
      %731 = vmatpush1.bf16.msra.mxu0 0
      %732 = vmatprep.subr.bf16.mxu0 0
      %733 = vmatpush1.bf16.msra.mxu0 0
      %734 = vmatprep.subr.bf16.mxu0 0
      %735 = vmatpush1.bf16.msra.mxu0 0
      %736 = vmatprep.subr.bf16.mxu0 0
      %737 = vmatpush1.bf16.msra.mxu0 0
      %738 = vmatprep.subr.bf16.mxu0 0
      %739 = vmatpush1.bf16.msra.mxu0 0
      %740 = vmatprep.subr.bf16.mxu0 0
      %741 = vmatpush1.bf16.msra.mxu0 0
      %742 = vmatprep.subr.bf16.mxu0 0
      %743 = vmatpush1.bf16.msra.mxu0 0
      %744 = vmatprep.mubr.bf16.mxu0 0
      %745 = vmatmul.mubr.bf16.gmra.mrb[0].mxu0 %v698
      %v746 = vpop.f32.mrb[0].mxu0
      %v747 = vadd.f32 %v652, %v746
      %v748 = vpop.f32.mrb[0].mxu0
      %v749 = vpop.f32.mrb[0].mxu0
      %v750 = vadd.f32 %v655, %v749
      %v751 = vpop.f32.mrb[0].mxu0
      %752 = vmatprep.mubr.bf16.mxu0 0
      %753 = vmatmul.mubr.bf16.gmra.mrb[0].mxu0 %v701
      %v754 = vpop.f32.mrb[0].mxu0
      %v755 = vadd.f32 %v660, %v754
      %v756 = vpop.f32.mrb[0].mxu0
      %v757 = vpop.f32.mrb[0].mxu0
      %v758 = vadd.f32 %v663, %v757
      %v759 = vpop.f32.mrb[0].mxu0
      %760 = vmatprep.mubr.bf16.mxu0 0
      %761 = vmatmul.mubr.bf16.gmra.mrb[0].mxu0 %v704
      %v762 = vpop.f32.mrb[0].mxu0
      %v763 = vadd.f32 %v668, %v762
      %v764 = vpop.f32.mrb[0].mxu0
      %v765 = vpop.f32.mrb[0].mxu0
      %v766 = vadd.f32 %v671, %v765
      %v767 = vpop.f32.mrb[0].mxu0
      %768 = vmatprep.mubr.bf16.mxu0 0
      %769 = vmatmul.mubr.bf16.gmra.mrb[0].mxu0 %v707
      %v770 = vpop.f32.mrb[0].mxu0
      %v771 = vadd.f32 %v676, %v770
      %v772 = vpop.f32.mrb[0].mxu0
      %v773 = vpop.f32.mrb[0].mxu0
      %v774 = vadd.f32 %v679, %v773
      %v775 = vpop.f32.mrb[0].mxu0
      %776 = vdwg.mxu0
      %s777 = scalar_lea.vmem %s3, 24
      %v778 = vld [vmem:[%s777] sm:$0xf]
      %v779 = vld [vmem:[%s777 + $0x4] sm:$0xf]
      %v780 = vld [vmem:[%s777 + $0x8] sm:$0xf]
      %v781 = vpack.c.b16 %v683, %v586
      %v785 = vunpack.c.l.b16 %v778
      %v786 = vunpack.c.l.b16 %v779
      %v787 = vunpack.c.l.b16 %v780
      %v788 = vpack.c.b16 %v786, %v785
      %v789 = vpack.c.b16 %v787, %v787
      %v792 = vsel %vm600, %v781, 0
      %v795 = vsel %vm613, %v789, 0
      %797 = vmatprep.subr.bf16.mxu0 0
      %798 = vmatpush1.bf16.msra.mxu0 %v788
      %799 = vmatprep.subr.bf16.mxu0 0
      %800 = vmatpush1.bf16.msra.mxu0 %v795
      %801 = vmatprep.subr.bf16.mxu0 0
      %802 = vmatpush1.bf16.msra.mxu0 0
      %803 = vmatprep.subr.bf16.mxu0 0
      %804 = vmatpush1.bf16.msra.mxu0 0
      %805 = vmatprep.subr.bf16.mxu0 0
      %806 = vmatpush1.bf16.msra.mxu0 0
      %807 = vmatprep.subr.bf16.mxu0 0
      %808 = vmatpush1.bf16.msra.mxu0 0
      %809 = vmatprep.subr.bf16.mxu0 0
      %810 = vmatpush1.bf16.msra.mxu0 0
      %811 = vmatprep.subr.bf16.mxu0 0
      %812 = vmatpush1.bf16.msra.mxu0 0
      %813 = vmatprep.subr.bf16.mxu0 0
      %814 = vmatpush1.bf16.msra.mxu0 0
      %815 = vmatprep.subr.bf16.mxu0 0
      %816 = vmatpush1.bf16.msra.mxu0 0
      %817 = vmatprep.subr.bf16.mxu0 0
      %818 = vmatpush1.bf16.msra.mxu0 0
      %819 = vmatprep.subr.bf16.mxu0 0
      %820 = vmatpush1.bf16.msra.mxu0 0
      %821 = vmatprep.subr.bf16.mxu0 0
      %822 = vmatpush1.bf16.msra.mxu0 0
      %823 = vmatprep.subr.bf16.mxu0 0
      %824 = vmatpush1.bf16.msra.mxu0 0
      %825 = vmatprep.subr.bf16.mxu0 0
      %826 = vmatpush1.bf16.msra.mxu0 0
      %827 = vmatprep.subr.bf16.mxu0 0
      %828 = vmatpush1.bf16.msra.mxu0 0
      %829 = vmatprep.mubr.bf16.mxu0 0
      %830 = vmatmul.mubr.bf16.gmra.mrb[0].mxu0 %v701
      %v831 = vpop.f32.mrb[0].mxu0
      %v832 = vadd.f32 0.0, %v831
      %v833 = vpop.f32.mrb[0].mxu0
      %v834 = vpop.f32.mrb[0].mxu0
      %v835 = vadd.f32 0.0, %v834
      %v836 = vpop.f32.mrb[0].mxu0
      %837 = vmatprep.mubr.bf16.mxu0 0
      %838 = vmatmul.mubr.bf16.gmra.mrb[0].mxu0 %v704
      %v839 = vpop.f32.mrb[0].mxu0
      %v840 = vadd.f32 0.0, %v839
      %v841 = vpop.f32.mrb[0].mxu0
      %v842 = vpop.f32.mrb[0].mxu0
      %v843 = vadd.f32 0.0, %v842
      %v844 = vpop.f32.mrb[0].mxu0
      %845 = vmatprep.mubr.bf16.mxu0 0
      %846 = vmatmul.mubr.bf16.gmra.mrb[0].mxu0 %v707
      %v847 = vpop.f32.mrb[0].mxu0
      %v848 = vadd.f32 0.0, %v847
      %v849 = vpop.f32.mrb[0].mxu0
      %v850 = vpop.f32.mrb[0].mxu0
      %v851 = vadd.f32 0.0, %v850
      %v852 = vpop.f32.mrb[0].mxu0
      %853 = vmatprep.mubr.bf16.mxu0 0
      %854 = vmatmul.mubr.bf16.gmra.mrb[0].mxu0 %v792
      %v855 = vpop.f32.mrb[0].mxu0
      %v856 = vadd.f32 0.0, %v855
      %v857 = vpop.f32.mrb[0].mxu0
      %v858 = vpop.f32.mrb[0].mxu0
      %v859 = vadd.f32 0.0, %v858
      %v860 = vpop.f32.mrb[0].mxu0
      %861 = vdwg.mxu0
      %v862 = vadd.f32 %v747, %v832
      %v863 = vadd.f32 %v750, %v835
      %v864 = vadd.f32 %v755, %v840
      %v865 = vadd.f32 %v758, %v843
      %v866 = vadd.f32 %v763, %v848
      %v867 = vadd.f32 %v766, %v851
      %v868 = vadd.f32 %v771, %v856
      %v869 = vadd.f32 %v774, %v859
      %v870 = vpack.c.bf16 %v863, %v862
      %v871 = vpack.c.bf16 %v865, %v864
      %v872 = vpack.c.bf16 %v867, %v866
      %v873 = vpack.c.bf16 %v869, %v868
      %v878 = vunpack.c.l.b16 %v870
      %v879 = vunpack.c.h.b16 %v870
      %v880 = vunpack.c.l.b16 %v871
      %v881 = vunpack.c.h.b16 %v871
      %v882 = vunpack.c.l.b16 %v872
      %v883 = vunpack.c.h.b16 %v872
      %v884 = vunpack.c.l.b16 %v873
      %v885 = vunpack.c.h.b16 %v873
      %v886 = vpack.c.b16 %v878, %v878
      %v887 = vpack.c.b16 %v879, %v879
      %v888 = vpack.c.b16 %v880, %v880
      %v889 = vpack.c.b16 %v881, %v881
      %v890 = vpack.c.b16 %v882, %v882
      %v891 = vpack.c.b16 %v883, %v883
      %v892 = vpack.c.b16 %v884, %v884
      %v893 = vpack.c.b16 %v885, %v885
      %vm902 = vcmask 60416
      %903 = vst.msk [vmem:[%s230] sm:$0xf] %vm902, %v886
      %904 = vst.msk [vmem:[%s230 + $0x4] sm:$0xf] %vm902, %v887
      %905 = vst.msk [vmem:[%s230 + $0x8] sm:$0xf] %vm902, %v888
      %906 = vst.msk [vmem:[%s230 + $0xc] sm:$0xf] %vm902, %v889
      %907 = vst.msk [vmem:[%s230 + $0x10] sm:$0xf] %vm902, %v890
      %908 = vst.msk [vmem:[%s230 + $0x14] sm:$0xf] %vm902, %v891
      %909 = vst.msk [vmem:[%s230 + $0x18] sm:$0xf] %vm902, %v892
      %910 = vst.msk [vmem:[%s230 + $0x1c] sm:$0xf] %vm902, %v893
      %v911 = vsel %vm513, %v862, 0.0
      %v912 = vsel %vm513, %v863, 0.0
      %v913 = vadd.f32 %v911, %v912
      %v914 = vsel %vm513, %v864, 0.0
      %v915 = vadd.f32 %v913, %v914
      %v916 = vsel %vm513, %v865, 0.0
      %v917 = vadd.f32 %v915, %v916
      %v918 = vsel %vm513, %v866, 0.0
      %v919 = vadd.f32 %v917, %v918
      %v920 = vsel %vm513, %v867, 0.0
      %v921 = vadd.f32 %v919, %v920
      %v922 = vsel %vm513, %v868, 0.0
      %v923 = vadd.f32 %v921, %v922
      %v924 = vsel %vm513, %v869, 0.0
      %v925 = vadd.f32 %v923, %v924
      %v926 = vrot.slane %v925, 4
      %v927 = vadd.f32 %v925, %v926
      %v928 = vrot.slane %v927, 2
      %v929 = vadd.f32 %v927, %v928
      %v930 = vrot.slane %v929, 1
      %v931 = vadd.f32 %v929, %v930
      %v932 = vmul.f32 %v862, %v862
      %v933 = vmul.f32 %v863, %v863
      %v934 = vmul.f32 %v864, %v864
      %v935 = vmul.f32 %v865, %v865
      %v936 = vmul.f32 %v866, %v866
      %v937 = vmul.f32 %v867, %v867
      %v938 = vmul.f32 %v868, %v868
      %v939 = vmul.f32 %v869, %v869
      %v940 = vsel %vm513, %v932, 0.0
      %v941 = vsel %vm513, %v933, 0.0
      %v942 = vadd.f32 %v940, %v941
      %v943 = vsel %vm513, %v934, 0.0
      %v944 = vadd.f32 %v942, %v943
      %v945 = vsel %vm513, %v935, 0.0
      %v946 = vadd.f32 %v944, %v945
      %v947 = vsel %vm513, %v936, 0.0
      %v948 = vadd.f32 %v946, %v947
      %v949 = vsel %vm513, %v937, 0.0
      %v950 = vadd.f32 %v948, %v949
      %v951 = vsel %vm513, %v938, 0.0
      %v952 = vadd.f32 %v950, %v951
      %v953 = vsel %vm513, %v939, 0.0
      %v954 = vadd.f32 %v952, %v953
      %v955 = vrot.slane %v954, 4
      %v956 = vadd.f32 %v954, %v955
      %v957 = vrot.slane %v956, 2
      %v958 = vadd.f32 %v956, %v957
      %v959 = vrot.slane %v958, 1
      %v960 = vadd.f32 %v958, %v959
      %962 = vrot.lane.b32.xlu0 %v960, 8
      %v963 = vpop.permute.xlu0 %962
      %v965 = vsel %vm513, %v931, %v963
      %vm966 = vcmask 122880
      %967 = vst.msk [vmem:[%s233] sm:$0x1] %vm966, %v965
      %p968 = scmp.lt.s32.totalorder %s17, 1
      %s969 = scalar_select %p968, %s17, 1
      %s970 = smul.addr %s969, 8
      %s971 = smul.addr %s970, 4
      %s972 = scalar_lea.vmem %s4, %s971
      %p973 = scmp.lt.s32.totalorder %s17, 1
      %s974 = scalar_select %p973, %s17, 1
      %s975 = scalar_lea.vmem %s5, %s974
      // Predicated region
      $region37: #{down_pallas.4} parent=35 // pred_check
        %p976 = pneg %p124
      $region38: #{down_pallas.4} parent=35 // pred_check_branch
        %978 = sbr.rel (%p976) target = $region40
      $region39: #{down_pallas.4} parent=35 // pred_region
        _
      $region40: #{down_pallas.4} parent=35 // pred_fallthru
        _
      // Predicated region
      $region41: #{down_pallas.4} parent=35 // pred_check
        %p979 = pneg %p150
      $region42: #{down_pallas.4} parent=35 // pred_check_branch
        %981 = sbr.rel (%p979) target = $region44
      $region43: #{down_pallas.4} parent=35 // pred_region
        _
      $region44: #{down_pallas.4} parent=35 // pred_fallthru
        _
    $region36: #{down_pallas.4} parent=5 // pred_fallthru
      _
    %p982 = scmp.le.s32.totalorder 2, %s12
    // Predicated region
    $region45: #{down_pallas.4} parent=5 // pred_check
      %p983 = pneg %p982
    $region46: #{down_pallas.4} parent=5 // pred_check_branch
      %985 = sbr.rel (%p983) target = $region48
    $region47: #{down_pallas.4} parent=5 // pred_region
      %s986 = ssub.s32 %s12, 2
      // Predicated region
      $region49: #{down_pallas.4} parent=47 // pred_check
        %p987 = pneg %p130
      $region50: #{down_pallas.4} parent=47 // pred_check_branch
        %989 = sbr.rel (%p987) target = $region52
      $region51: #{down_pallas.4} parent=47 // pred_region
        %p990 = scmp.lt.s32.totalorder %s18, 1
        %s991 = scalar_select %p990, %s18, 1
        %s992 = smul.addr %s991, 8
        %s993 = smul.addr %s992, 4
        %s994 = scalar_lea.vmem %s4, %s993
      $region52: #{down_pallas.4} parent=47 // pred_fallthru
        _
      // Predicated region
      $region53: #{down_pallas.4} parent=47 // pred_check
        %p995 = pneg %p156
      $region54: #{down_pallas.4} parent=47 // pred_check_branch
        %997 = sbr.rel (%p995) target = $region56
      $region55: #{down_pallas.4} parent=47 // pred_region
        %p998 = scmp.lt.s32.totalorder %s18, 1
        %s999 = scalar_select %p998, %s18, 1
        %s1000 = scalar_lea.vmem %s5, %s999
      $region56: #{down_pallas.4} parent=47 // pred_fallthru
        _
    $region48: #{down_pallas.4} parent=5 // pred_fallthru
      _
  $region6: #{down_pallas.4} parent=0 // loop_footer
    %s16 = sadd.s32 1, %s12
  $region7: #{down_pallas.4} parent=0 // loop_footer_branch
    %11 = sbr.rel target = $region3
  $region8: #{down_pallas.4} parent=0 // loop_exit
    _

// kernel: down_pallas.3
$region0: #{down_pallas.3}
  #allocation0 [shape = 'u32[]', space=smem, size = 0x4, offset = 0x4, fixed_abs, tag = 'smem constant byte address 0x4 - core index']
  #allocation1 [shape = 'u32[144,128]{1,0:T(1,128)}', space=vmem, size = 0x12000, scoped, tag = 'internal scratch']
  %s0 = inlined_call_operand.vmem [shape: f32[2,4,256], index: 0, kind: input, shape index: {}]
  %s1 = inlined_call_operand.vmem [shape: bf16[3,12,8], index: 1, kind: input, shape index: {}]
  %s2 = inlined_call_operand.vmem [shape: bf16[2,64,8], index: 2, kind: output, shape index: {0}]
  %s3 = inlined_call_operand.vmem [shape: f32[2,1,16], index: 3, kind: output, shape index: {1}]
  %4 = xla_tuple %s2, %s3
  %s5 = sld [smem:[#allocation0]]
  $region49: #{down_pallas.3} parent=0
    _
  %s7 = ssub.s32 1, %s5
  %s8 = scalar_select 0, %s7, %s5
  loop: start=0, step=1, limit=4
  $region2: #{down_pallas.3} parent=0 // loop_pre_header
    _
  $region3: #{down_pallas.3} parent=0 // loop_header
    %s10 = sphi 0, %s14
    %p11 = scmp.ge.s32.totalorder %s10, 4
    %s20 = sphi 0, %s22
    %s23 = sphi 0, %s20
    %s24 = sphi 0, %s23
    %s40 = sphi 0, %s24
    %s44 = sphi 0, %s44
    %s46 = sphi 0, %s44
    %s47 = sphi 0, %s46
    %s61 = sphi 0, %s47
    %s67 = sphi 0, %s69
    %s70 = sphi 0, %s67
    %s71 = sphi 0, %s70
    %s87 = sphi 0, %s71
    %s93 = sphi 0, %s95
    %s96 = sphi 0, %s93
    %s97 = sphi 0, %s96
    %s113 = sphi 0, %s97
  $region4: #{down_pallas.3} parent=0 // loop_header_branch
    %13 = sbr.rel (%p11) target = $region8
  $region5: #{down_pallas.3} parent=0 // loop_body
    %s15 = ssub.s32 %s10, 1
    %s16 = ssub.s32 %s10, 2
    %s17 = sadd.s32 %s10, 1
    %s18 = ssub.s32 %s10, %s17
    %p19 = scmp.eq.s32.totalorder %s18, 0
    %s21 = sadd.s32 %s20, 1
    %s22 = scalar_select %p19, %s20, %s21
    %p25 = pneg %p19
    %p26 = scmp.eq.s32.totalorder %s10, 1
    %p27 = por %p25, %p26
    %p28 = scmp.ne.s32.totalorder %s20, %s23
    %p29 = scmp.eq.s32.totalorder %s10, 0
    %p30 = por %p28, %p29
    %p31 = scmp.ne.s32.totalorder %s20, %s23
    %p32 = scmp.eq.s32.totalorder %s15, 1
    %p33 = por %p31, %p32
    %p34 = scmp.ne.s32.totalorder %s23, %s24
    %p35 = scmp.eq.s32.totalorder %s15, 0
    %p36 = por %p34, %p35
    %p37 = scmp.ne.s32.totalorder %s23, %s24
    %p38 = scmp.eq.s32.totalorder %s16, 1
    %p39 = por %p37, %p38
    %p41 = scmp.ne.s32.totalorder %s24, %s40
    %p42 = scmp.eq.s32.totalorder %s16, 0
    %p43 = por %p41, %p42
    %s45 = sadd.s32 %s44, 1
    %p48 = scmp.eq.s32.totalorder %s10, 1
    %p49 = scmp.ne.s32.totalorder %s44, %s46
    %p50 = scmp.eq.s32.totalorder %s10, 0
    %p51 = por %p49, %p50
    %p52 = scmp.ne.s32.totalorder %s44, %s46
    %p53 = scmp.eq.s32.totalorder %s15, 1
    %p54 = por %p52, %p53
    %p55 = scmp.ne.s32.totalorder %s46, %s47
    %p56 = scmp.eq.s32.totalorder %s15, 0
    %p57 = por %p55, %p56
    %p58 = scmp.ne.s32.totalorder %s46, %s47
    %p59 = scmp.eq.s32.totalorder %s16, 1
    %p60 = por %p58, %p59
    %p62 = scmp.ne.s32.totalorder %s47, %s61
    %p63 = scmp.eq.s32.totalorder %s16, 0
    %p64 = por %p62, %p63
    %s65 = ssub.s32 %s10, %s17
    %p66 = scmp.eq.s32.totalorder %s65, 0
    %s68 = sadd.s32 %s67, 1
    %s69 = scalar_select %p66, %s67, %s68
    %p72 = pneg %p66
    %p73 = scmp.eq.s32.totalorder %s10, 1
    %p74 = por %p72, %p73
    %p75 = scmp.ne.s32.totalorder %s67, %s70
    %p76 = scmp.eq.s32.totalorder %s10, 0
    %p77 = por %p75, %p76
    %p78 = scmp.ne.s32.totalorder %s67, %s70
    %p79 = scmp.eq.s32.totalorder %s15, 1
    %p80 = por %p78, %p79
    %p81 = scmp.ne.s32.totalorder %s70, %s71
    %p82 = scmp.eq.s32.totalorder %s15, 0
    %p83 = por %p81, %p82
    %p84 = scmp.ne.s32.totalorder %s70, %s71
    %p85 = scmp.eq.s32.totalorder %s16, 1
    %p86 = por %p84, %p85
    %p88 = scmp.ne.s32.totalorder %s71, %s87
    %p89 = scmp.eq.s32.totalorder %s16, 0
    %p90 = por %p88, %p89
    %s91 = ssub.s32 %s10, %s17
    %p92 = scmp.eq.s32.totalorder %s91, 0
    %s94 = sadd.s32 %s93, 1
    %s95 = scalar_select %p92, %s93, %s94
    %p98 = pneg %p92
    %p99 = scmp.eq.s32.totalorder %s10, 1
    %p100 = por %p98, %p99
    %p101 = scmp.ne.s32.totalorder %s93, %s96
    %p102 = scmp.eq.s32.totalorder %s10, 0
    %p103 = por %p101, %p102
    %p104 = scmp.ne.s32.totalorder %s93, %s96
    %p105 = scmp.eq.s32.totalorder %s15, 1
    %p106 = por %p104, %p105
    %p107 = scmp.ne.s32.totalorder %s96, %s97
    %p108 = scmp.eq.s32.totalorder %s15, 0
    %p109 = por %p107, %p108
    %p110 = scmp.ne.s32.totalorder %s96, %s97
    %p111 = scmp.eq.s32.totalorder %s16, 1
    %p112 = por %p110, %p111
    %p114 = scmp.ne.s32.totalorder %s97, %s113
    %p115 = scmp.eq.s32.totalorder %s16, 0
    %p116 = por %p114, %p115
    %p117 = scmp.le.s32.totalorder 1, %s10
    %p118 = scmp.lt.s32.totalorder %s10, 3
    %p119 = pnand %p117, %p118
    %p120 = pneg %p119
    // Predicated region
    $region9: #{down_pallas.3} parent=5 // pred_check
      _
    $region10: #{down_pallas.3} parent=5 // pred_check_branch
      %122 = sbr.rel (%p119) target = $region12
    $region11: #{down_pallas.3} parent=5 // pred_region
      %s123 = ssub.s32 %s10, 1
      // Predicated region
      $region13: #{down_pallas.3} parent=11 // pred_check
        %p124 = pneg %p57
      $region14: #{down_pallas.3} parent=11 // pred_check_branch
        %126 = sbr.rel (%p124) target = $region16
      $region15: #{down_pallas.3} parent=11 // pred_region
        _
      $region16: #{down_pallas.3} parent=11 // pred_fallthru
        _
    $region12: #{down_pallas.3} parent=5 // pred_fallthru
      _
    %p127 = scmp.lt.s32.totalorder %s10, 2
    // Predicated region
    $region17: #{down_pallas.3} parent=5 // pred_check
      %p128 = pneg %p127
    $region18: #{down_pallas.3} parent=5 // pred_check_branch
      %130 = sbr.rel (%p128) target = $region20
    $region19: #{down_pallas.3} parent=5 // pred_region
      // Predicated region
      $region21: #{down_pallas.3} parent=19 // pred_check
        %p131 = pneg %p30
      $region22: #{down_pallas.3} parent=19 // pred_check_branch
        %133 = sbr.rel (%p131) target = $region24
      $region23: #{down_pallas.3} parent=19 // pred_region
        %p134 = scmp.lt.s32.totalorder %s10, 1
        %s135 = scalar_select %p134, %s10, 1
        %s136 = smul.addr %s135, 2
        %s137 = smul.addr %s136, 4
        %s138 = scalar_lea.vmem %s0, %s137
      $region24: #{down_pallas.3} parent=19 // pred_fallthru
        _
    $region20: #{down_pallas.3} parent=5 // pred_fallthru
      _
    %p139 = scmp.le.s32.totalorder 1, %s10
    %p140 = scmp.lt.s32.totalorder %s10, 3
    %p141 = pnand %p139, %p140
    %p142 = pneg %p141
    // Predicated region
    $region25: #{down_pallas.3} parent=5 // pred_check
      _
    $region26: #{down_pallas.3} parent=5 // pred_check_branch
      %144 = sbr.rel (%p141) target = $region28
    $region27: #{down_pallas.3} parent=5 // pred_region
      %s145 = ssub.s32 %s10, 1
      %p146 = scmp.lt.s32.totalorder %s15, 1
      %s147 = scalar_select %p146, %s15, 1
      %s148 = smul.addr %s147, 2
      %s149 = smul.addr %s148, 4
      %s150 = scalar_lea.vmem %s0, %s149
      %p151 = pneg %p36
      %p152 = pneg %p33
      %p153 = pneg %p57
      %p154 = pneg %p54
      %p155 = pneg %p83
      %p156 = pneg %p80
      %p157 = scmp.lt.s32.totalorder %s15, 1
      %s158 = scalar_select %p157, %s15, 1
      %s159 = smul.addr %s158, 8
      %s160 = smul.addr %s159, 4
      %s161 = scalar_lea.vmem %s2, %s160
      %p162 = pneg %p109
      %p163 = pneg %p106
      %p164 = scmp.lt.s32.totalorder %s15, 1
      %s165 = scalar_select %p164, %s15, 1
      %s166 = scalar_lea.vmem %s3, %s165
      %p167 = scmp.lt.s32.totalorder %s15, 1
      %s168 = scalar_select %p167, %s15, 1
      %s169 = smul.addr %s168, 2
      %s170 = smul.addr %s169, 4
      %s171 = scalar_lea.vmem %s0, %s170
      %p172 = scmp.lt.s32.totalorder %s15, 1
      %s173 = scalar_select %p172, %s15, 1
      %s174 = smul.addr %s173, 8
      %s175 = smul.addr %s174, 4
      %s176 = scalar_lea.vmem %s2, %s175
      %p177 = scmp.lt.s32.totalorder %s15, 1
      %s178 = scalar_select %p177, %s15, 1
      %s179 = scalar_lea.vmem %s3, %s178
      %v181 = vld [vmem:[%s171] sm:$0xff]
      %v183 = vcombine.high %v181, %v181
      %185 = vxpose.xlu0.b32.start [1/16] %v181, 128
      %186 = vxpose.xlu0.b32.cont [2/16] 0.0, 128
      %187 = vxpose.xlu0.b32.cont [3/16] 0.0, 128
      %188 = vxpose.xlu0.b32.cont [4/16] 0.0, 128
      %189 = vxpose.xlu0.b32.cont [5/16] 0.0, 128
      %190 = vxpose.xlu0.b32.cont [6/16] 0.0, 128
      %191 = vxpose.xlu0.b32.cont [7/16] 0.0, 128
      %192 = vxpose.xlu0.b32.cont [8/16] 0.0, 128
      %193 = vxpose.xlu0.b32.cont [9/16] 0.0, 128
      %194 = vxpose.xlu0.b32.cont [10/16] 0.0, 128
      %195 = vxpose.xlu0.b32.cont [11/16] 0.0, 128
      %196 = vxpose.xlu0.b32.cont [12/16] 0.0, 128
      %197 = vxpose.xlu0.b32.cont [13/16] 0.0, 128
      %198 = vxpose.xlu0.b32.cont [14/16] 0.0, 128
      %199 = vxpose.xlu0.b32.cont [15/16] 0.0, 128
      %200 = vxpose.xlu0.b32.end [16/16] 0.0, 128
      %v201 = vpop.trf.xlu0
      %v202 = vpop.trf.xlu0
      %v203 = vpop.trf.xlu0
      %v204 = vpop.trf.xlu0
      %v205 = vpop.trf.xlu0
      %v206 = vpop.trf.xlu0
      %v207 = vpop.trf.xlu0
      %v208 = vpop.trf.xlu0
      %v209 = vpop.trf.xlu0
      %v210 = vpop.trf.xlu0
      %v211 = vpop.trf.xlu0
      %v212 = vpop.trf.xlu0
      %v213 = vpop.trf.xlu0
      %v214 = vpop.trf.xlu0
      %v215 = vpop.trf.xlu0
      %v216 = vpop.trf.xlu0
      %217 = vxpose.xlu0.b32.start [1/16] %v183, 128
      %218 = vxpose.xlu0.b32.cont [2/16] 0.0, 128
      %219 = vxpose.xlu0.b32.cont [3/16] 0.0, 128
      %220 = vxpose.xlu0.b32.cont [4/16] 0.0, 128
      %221 = vxpose.xlu0.b32.cont [5/16] 0.0, 128
      %222 = vxpose.xlu0.b32.cont [6/16] 0.0, 128
      %223 = vxpose.xlu0.b32.cont [7/16] 0.0, 128
      %224 = vxpose.xlu0.b32.cont [8/16] 0.0, 128
      %225 = vxpose.xlu0.b32.cont [9/16] 0.0, 128
      %226 = vxpose.xlu0.b32.cont [10/16] 0.0, 128
      %227 = vxpose.xlu0.b32.cont [11/16] 0.0, 128
      %228 = vxpose.xlu0.b32.cont [12/16] 0.0, 128
      %229 = vxpose.xlu0.b32.cont [13/16] 0.0, 128
      %230 = vxpose.xlu0.b32.cont [14/16] 0.0, 128
      %231 = vxpose.xlu0.b32.cont [15/16] 0.0, 128
      %232 = vxpose.xlu0.b32.end [16/16] 0.0, 128
      %v233 = vpop.trf.xlu0
      %v234 = vpop.trf.xlu0
      %v235 = vpop.trf.xlu0
      %v236 = vpop.trf.xlu0
      %v237 = vpop.trf.xlu0
      %v238 = vpop.trf.xlu0
      %v239 = vpop.trf.xlu0
      %v240 = vpop.trf.xlu0
      %v241 = vpop.trf.xlu0
      %v242 = vpop.trf.xlu0
      %v243 = vpop.trf.xlu0
      %v244 = vpop.trf.xlu0
      %v245 = vpop.trf.xlu0
      %v246 = vpop.trf.xlu0
      %v247 = vpop.trf.xlu0
      %v248 = vpop.trf.xlu0
      %v249 = vmax.f32 %v201, %v203
      %v250 = vmax.f32 %v202, %v204
      %v251 = vmax.f32 %v205, %v207
      %v252 = vmax.f32 %v206, %v208
      %v253 = vmax.f32 %v209, %v211
      %v254 = vmax.f32 %v210, %v212
      %v255 = vmax.f32 %v213, %v215
      %v256 = vmax.f32 %v214, %v216
      %v257 = vmax.f32 %v233, %v235
      %v258 = vmax.f32 %v234, %v236
      %v259 = vmax.f32 %v237, %v239
      %v260 = vmax.f32 %v238, %v240
      %v261 = vmax.f32 %v241, %v243
      %v262 = vmax.f32 %v242, %v244
      %v263 = vmax.f32 %v245, %v247
      %v264 = vmax.f32 %v246, %v248
      %v281 = vcombine.high %v249, %v249
      %v283 = vunpack.c.l.s4 1983009808
      %v284 = vunpack.c.0.s8 %v283
      %v285 = vlaneseq
      %v286 = vshrl.u32 %v285, 7
      %v287 = vsub.s32 %v284, %v286
      %v288 = vrot.slane %v249, %v287
      %v290 = vunpack.c.l.s4 1983009808
      %v291 = vunpack.c.0.s8 %v290
      %v292 = vlaneseq
      %v293 = vshrl.u32 %v292, 7
      %v294 = vsub.s32 %v291, %v293
      %v295 = vrot.slane %v281, %v294
      %v296 = vcombine.high %v288, %v288
      %v297 = vcombine.high %v295, %v295
      %v298 = vcombine.high %v250, %v250
      %v300 = vunpack.c.l.s4 1983009808
      %v301 = vunpack.c.0.s8 %v300
      %v302 = vlaneseq
      %v303 = vshrl.u32 %v302, 7
      %v304 = vsub.s32 %v301, %v303
      %v305 = vrot.slane %v250, %v304
      %v307 = vunpack.c.l.s4 1983009808
      %v308 = vunpack.c.0.s8 %v307
      %v309 = vlaneseq
      %v310 = vshrl.u32 %v309, 7
      %v311 = vsub.s32 %v308, %v310
      %v312 = vrot.slane %v298, %v311
      %v313 = vcombine.high %v305, %v305
      %v314 = vcombine.high %v312, %v312
      %v315 = vcombine.high %v251, %v251
      %v317 = vunpack.c.l.s4 1983009808
      %v318 = vunpack.c.0.s8 %v317
      %v319 = vlaneseq
      %v320 = vshrl.u32 %v319, 7
      %v321 = vsub.s32 %v318, %v320
      %v322 = vrot.slane %v251, %v321
      %v324 = vunpack.c.l.s4 1983009808
      %v325 = vunpack.c.0.s8 %v324
      %v326 = vlaneseq
      %v327 = vshrl.u32 %v326, 7
      %v328 = vsub.s32 %v325, %v327
      %v329 = vrot.slane %v315, %v328
      %v330 = vcombine.high %v322, %v322
      %v331 = vcombine.high %v329, %v329
      %v332 = vcombine.high %v252, %v252
      %v334 = vunpack.c.l.s4 1983009808
      %v335 = vunpack.c.0.s8 %v334
      %v336 = vlaneseq
      %v337 = vshrl.u32 %v336, 7
      %v338 = vsub.s32 %v335, %v337
      %v339 = vrot.slane %v252, %v338
      %v341 = vunpack.c.l.s4 1983009808
      %v342 = vunpack.c.0.s8 %v341
      %v343 = vlaneseq
      %v344 = vshrl.u32 %v343, 7
      %v345 = vsub.s32 %v342, %v344
      %v346 = vrot.slane %v332, %v345
      %v347 = vcombine.high %v339, %v339
      %v348 = vcombine.high %v346, %v346
      %v349 = vcombine.high %v253, %v253
      %v351 = vunpack.c.l.s4 1983009808
      %v352 = vunpack.c.0.s8 %v351
      %v353 = vlaneseq
      %v354 = vshrl.u32 %v353, 7
      %v355 = vsub.s32 %v352, %v354
      %v356 = vrot.slane %v253, %v355
      %v358 = vunpack.c.l.s4 1983009808
      %v359 = vunpack.c.0.s8 %v358
      %v360 = vlaneseq
      %v361 = vshrl.u32 %v360, 7
      %v362 = vsub.s32 %v359, %v361
      %v363 = vrot.slane %v349, %v362
      %v364 = vcombine.high %v356, %v356
      %v365 = vcombine.high %v363, %v363
      %v366 = vcombine.high %v254, %v254
      %v368 = vunpack.c.l.s4 1983009808
      %v369 = vunpack.c.0.s8 %v368
      %v370 = vlaneseq
      %v371 = vshrl.u32 %v370, 7
      %v372 = vsub.s32 %v369, %v371
      %v373 = vrot.slane %v254, %v372
      %v375 = vunpack.c.l.s4 1983009808
      %v376 = vunpack.c.0.s8 %v375
      %v377 = vlaneseq
      %v378 = vshrl.u32 %v377, 7
      %v379 = vsub.s32 %v376, %v378
      %v380 = vrot.slane %v366, %v379
      %v381 = vcombine.high %v373, %v373
      %v382 = vcombine.high %v380, %v380
      %v383 = vcombine.high %v255, %v255
      %v385 = vunpack.c.l.s4 1983009808
      %v386 = vunpack.c.0.s8 %v385
      %v387 = vlaneseq
      %v388 = vshrl.u32 %v387, 7
      %v389 = vsub.s32 %v386, %v388
      %v390 = vrot.slane %v255, %v389
      %v392 = vunpack.c.l.s4 1983009808
      %v393 = vunpack.c.0.s8 %v392
      %v394 = vlaneseq
      %v395 = vshrl.u32 %v394, 7
      %v396 = vsub.s32 %v393, %v395
      %v397 = vrot.slane %v383, %v396
      %v398 = vcombine.high %v390, %v390
      %v399 = vcombine.high %v397, %v397
      %v400 = vcombine.high %v256, %v256
      %v402 = vunpack.c.l.s4 1983009808
      %v403 = vunpack.c.0.s8 %v402
      %v404 = vlaneseq
      %v405 = vshrl.u32 %v404, 7
      %v406 = vsub.s32 %v403, %v405
      %v407 = vrot.slane %v256, %v406
      %v409 = vunpack.c.l.s4 1983009808
      %v410 = vunpack.c.0.s8 %v409
      %v411 = vlaneseq
      %v412 = vshrl.u32 %v411, 7
      %v413 = vsub.s32 %v410, %v412
      %v414 = vrot.slane %v400, %v413
      %v415 = vcombine.high %v407, %v407
      %v416 = vcombine.high %v414, %v414
      %v417 = vcombine.high %v257, %v257
      %v419 = vunpack.c.l.s4 1983009808
      %v420 = vunpack.c.0.s8 %v419
      %v421 = vlaneseq
      %v422 = vshrl.u32 %v421, 7
      %v423 = vsub.s32 %v420, %v422
      %v424 = vrot.slane %v257, %v423
      %v426 = vunpack.c.l.s4 1983009808
      %v427 = vunpack.c.0.s8 %v426
      %v428 = vlaneseq
      %v429 = vshrl.u32 %v428, 7
      %v430 = vsub.s32 %v427, %v429
      %v431 = vrot.slane %v417, %v430
      %v432 = vcombine.high %v424, %v424
      %v433 = vcombine.high %v431, %v431
      %v434 = vcombine.high %v258, %v258
      %v436 = vunpack.c.l.s4 1983009808
      %v437 = vunpack.c.0.s8 %v436
      %v438 = vlaneseq
      %v439 = vshrl.u32 %v438, 7
      %v440 = vsub.s32 %v437, %v439
      %v441 = vrot.slane %v258, %v440
      %v443 = vunpack.c.l.s4 1983009808
      %v444 = vunpack.c.0.s8 %v443
      %v445 = vlaneseq
      %v446 = vshrl.u32 %v445, 7
      %v447 = vsub.s32 %v444, %v446
      %v448 = vrot.slane %v434, %v447
      %v449 = vcombine.high %v441, %v441
      %v450 = vcombine.high %v448, %v448
      %v451 = vcombine.high %v259, %v259
      %v453 = vunpack.c.l.s4 1983009808
      %v454 = vunpack.c.0.s8 %v453
      %v455 = vlaneseq
      %v456 = vshrl.u32 %v455, 7
      %v457 = vsub.s32 %v454, %v456
      %v458 = vrot.slane %v259, %v457
      %v460 = vunpack.c.l.s4 1983009808
      %v461 = vunpack.c.0.s8 %v460
      %v462 = vlaneseq
      %v463 = vshrl.u32 %v462, 7
      %v464 = vsub.s32 %v461, %v463
      %v465 = vrot.slane %v451, %v464
      %v466 = vcombine.high %v458, %v458
      %v467 = vcombine.high %v465, %v465
      %v468 = vcombine.high %v260, %v260
      %v470 = vunpack.c.l.s4 1983009808
      %v471 = vunpack.c.0.s8 %v470
      %v472 = vlaneseq
      %v473 = vshrl.u32 %v472, 7
      %v474 = vsub.s32 %v471, %v473
      %v475 = vrot.slane %v260, %v474
      %v477 = vunpack.c.l.s4 1983009808
      %v478 = vunpack.c.0.s8 %v477
      %v479 = vlaneseq
      %v480 = vshrl.u32 %v479, 7
      %v481 = vsub.s32 %v478, %v480
      %v482 = vrot.slane %v468, %v481
      %v483 = vcombine.high %v475, %v475
      %v484 = vcombine.high %v482, %v482
      %v485 = vcombine.high %v261, %v261
      %v487 = vunpack.c.l.s4 1983009808
      %v488 = vunpack.c.0.s8 %v487
      %v489 = vlaneseq
      %v490 = vshrl.u32 %v489, 7
      %v491 = vsub.s32 %v488, %v490
      %v492 = vrot.slane %v261, %v491
      %v494 = vunpack.c.l.s4 1983009808
      %v495 = vunpack.c.0.s8 %v494
      %v496 = vlaneseq
      %v497 = vshrl.u32 %v496, 7
      %v498 = vsub.s32 %v495, %v497
      %v499 = vrot.slane %v485, %v498
      %v500 = vcombine.high %v492, %v492
      %v501 = vcombine.high %v499, %v499
      %v502 = vcombine.high %v262, %v262
      %v504 = vunpack.c.l.s4 1983009808
      %v505 = vunpack.c.0.s8 %v504
      %v506 = vlaneseq
      %v507 = vshrl.u32 %v506, 7
      %v508 = vsub.s32 %v505, %v507
      %v509 = vrot.slane %v262, %v508
      %v511 = vunpack.c.l.s4 1983009808
      %v512 = vunpack.c.0.s8 %v511
      %v513 = vlaneseq
      %v514 = vshrl.u32 %v513, 7
      %v515 = vsub.s32 %v512, %v514
      %v516 = vrot.slane %v502, %v515
      %v517 = vcombine.high %v509, %v509
      %v518 = vcombine.high %v516, %v516
      %v519 = vcombine.high %v263, %v263
      %v521 = vunpack.c.l.s4 1983009808
      %v522 = vunpack.c.0.s8 %v521
      %v523 = vlaneseq
      %v524 = vshrl.u32 %v523, 7
      %v525 = vsub.s32 %v522, %v524
      %v526 = vrot.slane %v263, %v525
      %v528 = vunpack.c.l.s4 1983009808
      %v529 = vunpack.c.0.s8 %v528
      %v530 = vlaneseq
      %v531 = vshrl.u32 %v530, 7
      %v532 = vsub.s32 %v529, %v531
      %v533 = vrot.slane %v519, %v532
      %v534 = vcombine.high %v526, %v526
      %v535 = vcombine.high %v533, %v533
      %v536 = vcombine.high %v264, %v264
      %v538 = vunpack.c.l.s4 1983009808
      %v539 = vunpack.c.0.s8 %v538
      %v540 = vlaneseq
      %v541 = vshrl.u32 %v540, 7
      %v542 = vsub.s32 %v539, %v541
      %v543 = vrot.slane %v264, %v542
      %v545 = vunpack.c.l.s4 1983009808
      %v546 = vunpack.c.0.s8 %v545
      %v547 = vlaneseq
      %v548 = vshrl.u32 %v547, 7
      %v549 = vsub.s32 %v546, %v548
      %v550 = vrot.slane %v536, %v549
      %v551 = vcombine.high %v543, %v543
      %v552 = vcombine.high %v550, %v550
      %v617 = vrot.slane %v288, 7
      %v618 = vrot.slane %v617, 2
      %v619 = vrot.slane %v296, 7
      %v620 = vrot.slane %v619, 2
      %v621 = vrot.slane %v295, 7
      %v622 = vrot.slane %v621, 2
      %v623 = vrot.slane %v297, 7
      %v624 = vrot.slane %v623, 2
      %v625 = vrot.slane %v305, 7
      %v626 = vrot.slane %v625, 2
      %v627 = vrot.slane %v313, 7
      %v628 = vrot.slane %v627, 2
      %v629 = vrot.slane %v312, 7
      %v630 = vrot.slane %v629, 2
      %v631 = vrot.slane %v314, 7
      %v632 = vrot.slane %v631, 2
      %v633 = vrot.slane %v322, 7
      %v634 = vrot.slane %v633, 2
      %v635 = vrot.slane %v330, 7
      %v636 = vrot.slane %v635, 2
      %v637 = vrot.slane %v329, 7
      %v638 = vrot.slane %v637, 2
      %v639 = vrot.slane %v331, 7
      %v640 = vrot.slane %v639, 2
      %v641 = vrot.slane %v339, 7
      %v642 = vrot.slane %v641, 2
      %v643 = vrot.slane %v347, 7
      %v644 = vrot.slane %v643, 2
      %v645 = vrot.slane %v346, 7
      %v646 = vrot.slane %v645, 2
      %v647 = vrot.slane %v348, 7
      %v648 = vrot.slane %v647, 2
      %v649 = vrot.slane %v356, 7
      %v650 = vrot.slane %v649, 2
      %v651 = vrot.slane %v364, 7
      %v652 = vrot.slane %v651, 2
      %v653 = vrot.slane %v363, 7
      %v654 = vrot.slane %v653, 2
      %v655 = vrot.slane %v365, 7
      %v656 = vrot.slane %v655, 2
      %v657 = vrot.slane %v373, 7
      %v658 = vrot.slane %v657, 2
      %v659 = vrot.slane %v381, 7
      %v660 = vrot.slane %v659, 2
      %v661 = vrot.slane %v380, 7
      %v662 = vrot.slane %v661, 2
      %v663 = vrot.slane %v382, 7
      %v664 = vrot.slane %v663, 2
      %v665 = vrot.slane %v390, 7
      %v666 = vrot.slane %v665, 2
      %v667 = vrot.slane %v398, 7
      %v668 = vrot.slane %v667, 2
      %v669 = vrot.slane %v397, 7
      %v670 = vrot.slane %v669, 2
      %v671 = vrot.slane %v399, 7
      %v672 = vrot.slane %v671, 2
      %v673 = vrot.slane %v407, 7
      %v674 = vrot.slane %v673, 2
      %v675 = vrot.slane %v415, 7
      %v676 = vrot.slane %v675, 2
      %v677 = vrot.slane %v414, 7
      %v678 = vrot.slane %v677, 2
      %v679 = vrot.slane %v416, 7
      %v680 = vrot.slane %v679, 2
      %v681 = vrot.slane %v424, 7
      %v682 = vrot.slane %v681, 2
      %v683 = vrot.slane %v432, 7
      %v684 = vrot.slane %v683, 2
      %v685 = vrot.slane %v431, 7
      %v686 = vrot.slane %v685, 2
      %v687 = vrot.slane %v433, 7
      %v688 = vrot.slane %v687, 2
      %v689 = vrot.slane %v441, 7
      %v690 = vrot.slane %v689, 2
      %v691 = vrot.slane %v449, 7
      %v692 = vrot.slane %v691, 2
      %v693 = vrot.slane %v448, 7
      %v694 = vrot.slane %v693, 2
      %v695 = vrot.slane %v450, 7
      %v696 = vrot.slane %v695, 2
      %v697 = vrot.slane %v458, 7
      %v698 = vrot.slane %v697, 2
      %v699 = vrot.slane %v466, 7
      %v700 = vrot.slane %v699, 2
      %v701 = vrot.slane %v465, 7
      %v702 = vrot.slane %v701, 2
      %v703 = vrot.slane %v467, 7
      %v704 = vrot.slane %v703, 2
      %v705 = vrot.slane %v475, 7
      %v706 = vrot.slane %v705, 2
      %v707 = vrot.slane %v483, 7
      %v708 = vrot.slane %v707, 2
      %v709 = vrot.slane %v482, 7
      %v710 = vrot.slane %v709, 2
      %v711 = vrot.slane %v484, 7
      %v712 = vrot.slane %v711, 2
      %v713 = vrot.slane %v492, 7
      %v714 = vrot.slane %v713, 2
      %v715 = vrot.slane %v500, 7
      %v716 = vrot.slane %v715, 2
      %v717 = vrot.slane %v499, 7
      %v718 = vrot.slane %v717, 2
      %v719 = vrot.slane %v501, 7
      %v720 = vrot.slane %v719, 2
      %v721 = vrot.slane %v509, 7
      %v722 = vrot.slane %v721, 2
      %v723 = vrot.slane %v517, 7
      %v724 = vrot.slane %v723, 2
      %v725 = vrot.slane %v516, 7
      %v726 = vrot.slane %v725, 2
      %v727 = vrot.slane %v518, 7
      %v728 = vrot.slane %v727, 2
      %v729 = vrot.slane %v526, 7
      %v730 = vrot.slane %v729, 2
      %v731 = vrot.slane %v534, 7
      %v732 = vrot.slane %v731, 2
      %v733 = vrot.slane %v533, 7
      %v734 = vrot.slane %v733, 2
      %v735 = vrot.slane %v535, 7
      %v736 = vrot.slane %v735, 2
      %v737 = vrot.slane %v543, 7
      %v738 = vrot.slane %v737, 2
      %v739 = vrot.slane %v551, 7
      %v740 = vrot.slane %v739, 2
      %v741 = vrot.slane %v550, 7
      %v742 = vrot.slane %v741, 2
      %v743 = vrot.slane %v552, 7
      %v744 = vrot.slane %v743, 2
      %v809 = vmax.f32 %v288, %v618
      %v810 = vmax.f32 %v296, %v620
      %v811 = vmax.f32 %v295, %v622
      %v812 = vmax.f32 %v297, %v624
      %v813 = vmax.f32 %v305, %v626
      %v814 = vmax.f32 %v313, %v628
      %v815 = vmax.f32 %v312, %v630
      %v816 = vmax.f32 %v314, %v632
      %v817 = vmax.f32 %v322, %v634
      %v818 = vmax.f32 %v330, %v636
      %v819 = vmax.f32 %v329, %v638
      %v820 = vmax.f32 %v331, %v640
      %v821 = vmax.f32 %v339, %v642
      %v822 = vmax.f32 %v347, %v644
      %v823 = vmax.f32 %v346, %v646
      %v824 = vmax.f32 %v348, %v648
      %v825 = vmax.f32 %v356, %v650
      %v826 = vmax.f32 %v364, %v652
      %v827 = vmax.f32 %v363, %v654
      %v828 = vmax.f32 %v365, %v656
      %v829 = vmax.f32 %v373, %v658
      %v830 = vmax.f32 %v381, %v660
      %v831 = vmax.f32 %v380, %v662
      %v832 = vmax.f32 %v382, %v664
      %v833 = vmax.f32 %v390, %v666
      %v834 = vmax.f32 %v398, %v668
      %v835 = vmax.f32 %v397, %v670
      %v836 = vmax.f32 %v399, %v672
      %v837 = vmax.f32 %v407, %v674
      %v838 = vmax.f32 %v415, %v676
      %v839 = vmax.f32 %v414, %v678
      %v840 = vmax.f32 %v416, %v680
      %v841 = vmax.f32 %v424, %v682
      %v842 = vmax.f32 %v432, %v684
      %v843 = vmax.f32 %v431, %v686
      %v844 = vmax.f32 %v433, %v688
      %v845 = vmax.f32 %v441, %v690
      %v846 = vmax.f32 %v449, %v692
      %v847 = vmax.f32 %v448, %v694
      %v848 = vmax.f32 %v450, %v696
      %v849 = vmax.f32 %v458, %v698
      %v850 = vmax.f32 %v466, %v700
      %v851 = vmax.f32 %v465, %v702
      %v852 = vmax.f32 %v467, %v704
      %v853 = vmax.f32 %v475, %v706
      %v854 = vmax.f32 %v483, %v708
      %v855 = vmax.f32 %v482, %v710
      %v856 = vmax.f32 %v484, %v712
      %v857 = vmax.f32 %v492, %v714
      %v858 = vmax.f32 %v500, %v716
      %v859 = vmax.f32 %v499, %v718
      %v860 = vmax.f32 %v501, %v720
      %v861 = vmax.f32 %v509, %v722
      %v862 = vmax.f32 %v517, %v724
      %v863 = vmax.f32 %v516, %v726
      %v864 = vmax.f32 %v518, %v728
      %v865 = vmax.f32 %v526, %v730
      %v866 = vmax.f32 %v534, %v732
      %v867 = vmax.f32 %v533, %v734
      %v868 = vmax.f32 %v535, %v736
      %v869 = vmax.f32 %v543, %v738
      %v870 = vmax.f32 %v551, %v740
      %v871 = vmax.f32 %v550, %v742
      %v872 = vmax.f32 %v552, %v744
      %v873 = vpack.c.bf16 %v809, %v809
      %v874 = vpack.c.bf16 %v810, %v810
      %v875 = vpack.c.bf16 %v811, %v811
      %v876 = vpack.c.bf16 %v812, %v812
      %v877 = vpack.c.bf16 %v813, %v813
      %v878 = vpack.c.bf16 %v814, %v814
      %v879 = vpack.c.bf16 %v815, %v815
      %v880 = vpack.c.bf16 %v816, %v816
      %v881 = vpack.c.bf16 %v817, %v817
      %v882 = vpack.c.bf16 %v818, %v818
      %v883 = vpack.c.bf16 %v819, %v819
      %v884 = vpack.c.bf16 %v820, %v820
      %v885 = vpack.c.bf16 %v821, %v821
      %v886 = vpack.c.bf16 %v822, %v822
      %v887 = vpack.c.bf16 %v823, %v823
      %v888 = vpack.c.bf16 %v824, %v824
      %v889 = vpack.c.bf16 %v825, %v825
      %v890 = vpack.c.bf16 %v826, %v826
      %v891 = vpack.c.bf16 %v827, %v827
      %v892 = vpack.c.bf16 %v828, %v828
      %v893 = vpack.c.bf16 %v829, %v829
      %v894 = vpack.c.bf16 %v830, %v830
      %v895 = vpack.c.bf16 %v831, %v831
      %v896 = vpack.c.bf16 %v832, %v832
      %v897 = vpack.c.bf16 %v833, %v833
      %v898 = vpack.c.bf16 %v834, %v834
      %v899 = vpack.c.bf16 %v835, %v835
      %v900 = vpack.c.bf16 %v836, %v836
      %v901 = vpack.c.bf16 %v837, %v837
      %v902 = vpack.c.bf16 %v838, %v838
      %v903 = vpack.c.bf16 %v839, %v839
      %v904 = vpack.c.bf16 %v840, %v840
      %v905 = vpack.c.bf16 %v841, %v841
      %v906 = vpack.c.bf16 %v842, %v842
      %v907 = vpack.c.bf16 %v843, %v843
      %v908 = vpack.c.bf16 %v844, %v844
      %v909 = vpack.c.bf16 %v845, %v845
      %v910 = vpack.c.bf16 %v846, %v846
      %v911 = vpack.c.bf16 %v847, %v847
      %v912 = vpack.c.bf16 %v848, %v848
      %v913 = vpack.c.bf16 %v849, %v849
      %v914 = vpack.c.bf16 %v850, %v850
      %v915 = vpack.c.bf16 %v851, %v851
      %v916 = vpack.c.bf16 %v852, %v852
      %v917 = vpack.c.bf16 %v853, %v853
      %v918 = vpack.c.bf16 %v854, %v854
      %v919 = vpack.c.bf16 %v855, %v855
      %v920 = vpack.c.bf16 %v856, %v856
      %v921 = vpack.c.bf16 %v857, %v857
      %v922 = vpack.c.bf16 %v858, %v858
      %v923 = vpack.c.bf16 %v859, %v859
      %v924 = vpack.c.bf16 %v860, %v860
      %v925 = vpack.c.bf16 %v861, %v861
      %v926 = vpack.c.bf16 %v862, %v862
      %v927 = vpack.c.bf16 %v863, %v863
      %v928 = vpack.c.bf16 %v864, %v864
      %v929 = vpack.c.bf16 %v865, %v865
      %v930 = vpack.c.bf16 %v866, %v866
      %v931 = vpack.c.bf16 %v867, %v867
      %v932 = vpack.c.bf16 %v868, %v868
      %v933 = vpack.c.bf16 %v869, %v869
      %v934 = vpack.c.bf16 %v870, %v870
      %v935 = vpack.c.bf16 %v871, %v871
      %v936 = vpack.c.bf16 %v872, %v872
      %v1001 = vunpack.c.l.b16 %v873
      %v1002 = vunpack.c.l.b16 %v874
      %v1003 = vunpack.c.l.b16 %v875
      %v1004 = vunpack.c.l.b16 %v876
      %v1005 = vunpack.c.l.b16 %v877
      %v1006 = vunpack.c.l.b16 %v878
      %v1007 = vunpack.c.l.b16 %v879
      %v1008 = vunpack.c.l.b16 %v880
      %v1009 = vunpack.c.l.b16 %v881
      %v1010 = vunpack.c.l.b16 %v882
      %v1011 = vunpack.c.l.b16 %v883
      %v1012 = vunpack.c.l.b16 %v884
      %v1013 = vunpack.c.l.b16 %v885
      %v1014 = vunpack.c.l.b16 %v886
      %v1015 = vunpack.c.l.b16 %v887
      %v1016 = vunpack.c.l.b16 %v888
      %v1017 = vunpack.c.l.b16 %v889
      %v1018 = vunpack.c.l.b16 %v890
      %v1019 = vunpack.c.l.b16 %v891
      %v1020 = vunpack.c.l.b16 %v892
      %v1021 = vunpack.c.l.b16 %v893
      %v1022 = vunpack.c.l.b16 %v894
      %v1023 = vunpack.c.l.b16 %v895
      %v1024 = vunpack.c.l.b16 %v896
      %v1025 = vunpack.c.l.b16 %v897
      %v1026 = vunpack.c.l.b16 %v898
      %v1027 = vunpack.c.l.b16 %v899
      %v1028 = vunpack.c.l.b16 %v900
      %v1029 = vunpack.c.l.b16 %v901
      %v1030 = vunpack.c.l.b16 %v902
      %v1031 = vunpack.c.l.b16 %v903
      %v1032 = vunpack.c.l.b16 %v904
      %v1033 = vunpack.c.l.b16 %v905
      %v1034 = vunpack.c.l.b16 %v906
      %v1035 = vunpack.c.l.b16 %v907
      %v1036 = vunpack.c.l.b16 %v908
      %v1037 = vunpack.c.l.b16 %v909
      %v1038 = vunpack.c.l.b16 %v910
      %v1039 = vunpack.c.l.b16 %v911
      %v1040 = vunpack.c.l.b16 %v912
      %v1041 = vunpack.c.l.b16 %v913
      %v1042 = vunpack.c.l.b16 %v914
      %v1043 = vunpack.c.l.b16 %v915
      %v1044 = vunpack.c.l.b16 %v916
      %v1045 = vunpack.c.l.b16 %v917
      %v1046 = vunpack.c.l.b16 %v918
      %v1047 = vunpack.c.l.b16 %v919
      %v1048 = vunpack.c.l.b16 %v920
      %v1049 = vunpack.c.l.b16 %v921
      %v1050 = vunpack.c.l.b16 %v922
      %v1051 = vunpack.c.l.b16 %v923
      %v1052 = vunpack.c.l.b16 %v924
      %v1053 = vunpack.c.l.b16 %v925
      %v1054 = vunpack.c.l.b16 %v926
      %v1055 = vunpack.c.l.b16 %v927
      %v1056 = vunpack.c.l.b16 %v928
      %v1057 = vunpack.c.l.b16 %v929
      %v1058 = vunpack.c.l.b16 %v930
      %v1059 = vunpack.c.l.b16 %v931
      %v1060 = vunpack.c.l.b16 %v932
      %v1061 = vunpack.c.l.b16 %v933
      %v1062 = vunpack.c.l.b16 %v934
      %v1063 = vunpack.c.l.b16 %v935
      %v1064 = vunpack.c.l.b16 %v936
      %v1065 = vrot.slane %v1002, 7
      %vm1066 = vcmask 1041409
      %v1067 = vsel %vm1066, %v1065, %v1001
      %v1068 = vrot.slane %v1003, 6
      %vm1069 = vcmask 1042434
      %v1070 = vsel %vm1069, %v1068, %v1067
      %v1071 = vrot.slane %v1004, 5
      %vm1072 = vcmask 1043459
      %v1073 = vsel %vm1072, %v1071, %v1070
      %v1074 = vrot.slane %v1005, 4
      %vm1075 = vcmask 1044484
      %v1076 = vsel %vm1075, %v1074, %v1073
      %v1077 = vrot.slane %v1006, 3
      %vm1078 = vcmask 1045509
      %v1079 = vsel %vm1078, %v1077, %v1076
      %v1080 = vrot.slane %v1007, 2
      %vm1081 = vcmask 1046534
      %v1082 = vsel %vm1081, %v1080, %v1079
      %v1083 = vrot.slane %v1008, 1
      %vm1084 = vcmask 1047559
      %v1085 = vsel %vm1084, %v1083, %v1082
      %v1086 = vrot.slane %v1010, 7
      %v1087 = vsel %vm1066, %v1086, %v1009
      %v1088 = vrot.slane %v1011, 6
      %v1089 = vsel %vm1069, %v1088, %v1087
      %v1090 = vrot.slane %v1012, 5
      %v1091 = vsel %vm1072, %v1090, %v1089
      %v1092 = vrot.slane %v1013, 4
      %v1093 = vsel %vm1075, %v1092, %v1091
      %v1094 = vrot.slane %v1014, 3
      %v1095 = vsel %vm1078, %v1094, %v1093
      %v1096 = vrot.slane %v1015, 2
      %v1097 = vsel %vm1081, %v1096, %v1095
      %v1098 = vrot.slane %v1016, 1
      %v1099 = vsel %vm1084, %v1098, %v1097
      %v1100 = vrot.slane %v1018, 7
      %v1101 = vsel %vm1066, %v1100, %v1017
      %v1102 = vrot.slane %v1019, 6
      %v1103 = vsel %vm1069, %v1102, %v1101
      %v1104 = vrot.slane %v1020, 5
      %v1105 = vsel %vm1072, %v1104, %v1103
      %v1106 = vrot.slane %v1021, 4
      %v1107 = vsel %vm1075, %v1106, %v1105
      %v1108 = vrot.slane %v1022, 3
      %v1109 = vsel %vm1078, %v1108, %v1107
      %v1110 = vrot.slane %v1023, 2
      %v1111 = vsel %vm1081, %v1110, %v1109
      %v1112 = vrot.slane %v1024, 1
      %v1113 = vsel %vm1084, %v1112, %v1111
      %v1114 = vrot.slane %v1026, 7
      %v1115 = vsel %vm1066, %v1114, %v1025
      %v1116 = vrot.slane %v1027, 6
      %v1117 = vsel %vm1069, %v1116, %v1115
      %v1118 = vrot.slane %v1028, 5
      %v1119 = vsel %vm1072, %v1118, %v1117
      %v1120 = vrot.slane %v1029, 4
      %v1121 = vsel %vm1075, %v1120, %v1119
      %v1122 = vrot.slane %v1030, 3
      %v1123 = vsel %vm1078, %v1122, %v1121
      %v1124 = vrot.slane %v1031, 2
      %v1125 = vsel %vm1081, %v1124, %v1123
      %v1126 = vrot.slane %v1032, 1
      %v1127 = vsel %vm1084, %v1126, %v1125
      %v1128 = vrot.slane %v1034, 7
      %v1129 = vsel %vm1066, %v1128, %v1033
      %v1130 = vrot.slane %v1035, 6
      %v1131 = vsel %vm1069, %v1130, %v1129
      %v1132 = vrot.slane %v1036, 5
      %v1133 = vsel %vm1072, %v1132, %v1131
      %v1134 = vrot.slane %v1037, 4
      %v1135 = vsel %vm1075, %v1134, %v1133
      %v1136 = vrot.slane %v1038, 3
      %v1137 = vsel %vm1078, %v1136, %v1135
      %v1138 = vrot.slane %v1039, 2
      %v1139 = vsel %vm1081, %v1138, %v1137
      %v1140 = vrot.slane %v1040, 1
      %v1141 = vsel %vm1084, %v1140, %v1139
      %v1142 = vrot.slane %v1042, 7
      %v1143 = vsel %vm1066, %v1142, %v1041
      %v1144 = vrot.slane %v1043, 6
      %v1145 = vsel %vm1069, %v1144, %v1143
      %v1146 = vrot.slane %v1044, 5
      %v1147 = vsel %vm1072, %v1146, %v1145
      %v1148 = vrot.slane %v1045, 4
      %v1149 = vsel %vm1075, %v1148, %v1147
      %v1150 = vrot.slane %v1046, 3
      %v1151 = vsel %vm1078, %v1150, %v1149
      %v1152 = vrot.slane %v1047, 2
      %v1153 = vsel %vm1081, %v1152, %v1151
      %v1154 = vrot.slane %v1048, 1
      %v1155 = vsel %vm1084, %v1154, %v1153
      %v1156 = vrot.slane %v1050, 7
      %v1157 = vsel %vm1066, %v1156, %v1049
      %v1158 = vrot.slane %v1051, 6
      %v1159 = vsel %vm1069, %v1158, %v1157
      %v1160 = vrot.slane %v1052, 5
      %v1161 = vsel %vm1072, %v1160, %v1159
      %v1162 = vrot.slane %v1053, 4
      %v1163 = vsel %vm1075, %v1162, %v1161
      %v1164 = vrot.slane %v1054, 3
      %v1165 = vsel %vm1078, %v1164, %v1163
      %v1166 = vrot.slane %v1055, 2
      %v1167 = vsel %vm1081, %v1166, %v1165
      %v1168 = vrot.slane %v1056, 1
      %v1169 = vsel %vm1084, %v1168, %v1167
      %v1170 = vrot.slane %v1058, 7
      %v1171 = vsel %vm1066, %v1170, %v1057
      %v1172 = vrot.slane %v1059, 6
      %v1173 = vsel %vm1069, %v1172, %v1171
      %v1174 = vrot.slane %v1060, 5
      %v1175 = vsel %vm1072, %v1174, %v1173
      %v1176 = vrot.slane %v1061, 4
      %v1177 = vsel %vm1075, %v1176, %v1175
      %v1178 = vrot.slane %v1062, 3
      %v1179 = vsel %vm1078, %v1178, %v1177
      %v1180 = vrot.slane %v1063, 2
      %v1181 = vsel %vm1081, %v1180, %v1179
      %v1182 = vrot.slane %v1064, 1
      %v1183 = vsel %vm1084, %v1182, %v1181
      %v1184 = vpack.c.b16 %v1085, %v1085
      %v1185 = vpack.c.b16 %v1099, %v1099
      %v1186 = vpack.c.b16 %v1113, %v1113
      %v1187 = vpack.c.b16 %v1127, %v1127
      %v1188 = vpack.c.b16 %v1141, %v1141
      %v1189 = vpack.c.b16 %v1155, %v1155
      %v1190 = vpack.c.b16 %v1169, %v1169
      %v1191 = vpack.c.b16 %v1183, %v1183
      %v1193 = vshrl.u32 0, 16
      %v1195 = vrot.slane %v1193, 7
      %v1196 = vshll.u32 0, 16
      %v1198 = vor.u32 %v1195, %v1196
      %v1200 = vshrl.u32 %v1184, 16
      %v1202 = vrot.slane %v1200, 7
      %v1203 = vshll.u32 %v1184, 16
      %v1205 = vor.u32 %v1202, %v1203
      %v1207 = vshrl.u32 %v1185, 16
      %v1209 = vrot.slane %v1207, 7
      %v1210 = vshll.u32 %v1185, 16
      %v1212 = vor.u32 %v1209, %v1210
      %v1214 = vshrl.u32 %v1186, 16
      %v1216 = vrot.slane %v1214, 7
      %v1217 = vshll.u32 %v1186, 16
      %v1219 = vor.u32 %v1216, %v1217
      %v1221 = vshrl.u32 %v1187, 16
      %v1223 = vrot.slane %v1221, 7
      %v1224 = vshll.u32 %v1187, 16
      %v1226 = vor.u32 %v1223, %v1224
      %v1228 = vshrl.u32 %v1188, 16
      %v1230 = vrot.slane %v1228, 7
      %v1231 = vshll.u32 %v1188, 16
      %v1233 = vor.u32 %v1230, %v1231
      %v1235 = vshrl.u32 %v1189, 16
      %v1237 = vrot.slane %v1235, 7
      %v1238 = vshll.u32 %v1189, 16
      %v1240 = vor.u32 %v1237, %v1238
      %v1242 = vshrl.u32 %v1190, 16
      %v1244 = vrot.slane %v1242, 7
      %v1245 = vshll.u32 %v1190, 16
      %v1247 = vor.u32 %v1244, %v1245
      %v1249 = vshrl.u32 %v1191, 16
      %v1251 = vrot.slane %v1249, 7
      %v1252 = vshll.u32 %v1191, 16
      %v1254 = vor.u32 %v1251, %v1252
      %vm1264 = vcmask 1040384
      %vm1265 = vsmask.f32 256
      %vm1266 = vmand %vm1264, %vm1265
      %v1267 = vsel %vm1266, 0, %v1198
      %v1268 = vsel %vm1266, 0, %v1205
      %v1269 = vsel %vm1266, 0, %v1212
      %v1270 = vsel %vm1266, 0, %v1219
      %v1271 = vsel %vm1266, 0, %v1226
      %v1272 = vsel %vm1266, 0, %v1233
      %v1273 = vsel %vm1266, 0, %v1240
      %v1274 = vsel %vm1266, 0, %v1247
      %v1275 = vsel %vm1266, 0, %v1254
      %vm1276 = vcmask 1044480
      %vm1277 = vsmask.f32 4352
      %vm1278 = vmand %vm1276, %vm1277
      %v1279 = vsel %vm1278, %v1267, 0
      %v1280 = vsel %vm1278, %v1268, 0
      %v1281 = vsel %vm1278, %v1269, 0
      %v1282 = vsel %vm1278, %v1270, 0
      %v1283 = vsel %vm1278, %v1271, 0
      %v1284 = vsel %vm1278, %v1272, 0
      %v1285 = vsel %vm1278, %v1273, 0
      %v1286 = vsel %vm1278, %v1274, 0
      %v1287 = vsel %vm1278, %v1275, 0
      %v1289 = vshrl.u32 %v1279, 16
      %v1291 = vshll.u32 %v1279, 16
      %v1293 = vrot.slane %v1291, 1
      %v1294 = vor.u32 %v1289, %v1293
      %v1296 = vshrl.u32 %v1280, 16
      %v1298 = vshll.u32 %v1280, 16
      %v1300 = vrot.slane %v1298, 1
      %v1301 = vor.u32 %v1296, %v1300
      %v1303 = vshrl.u32 %v1281, 16
      %v1305 = vshll.u32 %v1281, 16
      %v1307 = vrot.slane %v1305, 1
      %v1308 = vor.u32 %v1303, %v1307
      %v1310 = vshrl.u32 %v1282, 16
      %v1312 = vshll.u32 %v1282, 16
      %v1314 = vrot.slane %v1312, 1
      %v1315 = vor.u32 %v1310, %v1314
      %v1317 = vshrl.u32 %v1283, 16
      %v1319 = vshll.u32 %v1283, 16
      %v1321 = vrot.slane %v1319, 1
      %v1322 = vor.u32 %v1317, %v1321
      %v1324 = vshrl.u32 %v1284, 16
      %v1326 = vshll.u32 %v1284, 16
      %v1328 = vrot.slane %v1326, 1
      %v1329 = vor.u32 %v1324, %v1328
      %v1331 = vshrl.u32 %v1285, 16
      %v1333 = vshll.u32 %v1285, 16
      %v1335 = vrot.slane %v1333, 1
      %v1336 = vor.u32 %v1331, %v1335
      %v1338 = vshrl.u32 %v1286, 16
      %v1340 = vshll.u32 %v1286, 16
      %v1342 = vrot.slane %v1340, 1
      %v1343 = vor.u32 %v1338, %v1342
      %1344 = vrot.lane.b32.xlu0 %v1294, 4
      %v1345 = vpop.permute.xlu0 %1344
      %1346 = vrot.lane.b32.xlu0 %v1301, 4
      %v1347 = vpop.permute.xlu0 %1346
      %1348 = vrot.lane.b32.xlu0 %v1308, 4
      %v1349 = vpop.permute.xlu0 %1348
      %1350 = vrot.lane.b32.xlu0 %v1315, 4
      %v1351 = vpop.permute.xlu0 %1350
      %1352 = vrot.lane.b32.xlu0 %v1322, 4
      %v1353 = vpop.permute.xlu0 %1352
      %1354 = vrot.lane.b32.xlu0 %v1329, 4
      %v1355 = vpop.permute.xlu0 %1354
      %1356 = vrot.lane.b32.xlu0 %v1336, 4
      %v1357 = vpop.permute.xlu0 %1356
      %1358 = vrot.lane.b32.xlu0 %v1343, 4
      %v1359 = vpop.permute.xlu0 %1358
      %v1368 = vrot.slane %v1279, 1
      %v1369 = vrot.slane %v1280, 1
      %v1370 = vrot.slane %v1281, 1
      %v1371 = vrot.slane %v1282, 1
      %v1372 = vrot.slane %v1283, 1
      %v1373 = vrot.slane %v1284, 1
      %v1374 = vrot.slane %v1285, 1
      %v1375 = vrot.slane %v1286, 1
      %1376 = vrot.lane.b32.xlu0 %v1368, 8
      %v1377 = vpop.permute.xlu0 %1376
      %1378 = vrot.lane.b32.xlu0 %v1369, 8
      %v1379 = vpop.permute.xlu0 %1378
      %1380 = vrot.lane.b32.xlu0 %v1370, 8
      %v1381 = vpop.permute.xlu0 %1380
      %1382 = vrot.lane.b32.xlu0 %v1371, 8
      %v1383 = vpop.permute.xlu0 %1382
      %1384 = vrot.lane.b32.xlu0 %v1372, 8
      %v1385 = vpop.permute.xlu0 %1384
      %1386 = vrot.lane.b32.xlu0 %v1373, 8
      %v1387 = vpop.permute.xlu0 %1386
      %1388 = vrot.lane.b32.xlu0 %v1374, 8
      %v1389 = vpop.permute.xlu0 %1388
      %1390 = vrot.lane.b32.xlu0 %v1375, 8
      %v1391 = vpop.permute.xlu0 %1390
      %vm1392 = vcmask 31744
      %v1394 = vsel %vm1392, %v1279, %v1345
      %v1396 = vsel %vm1392, %v1280, %v1347
      %v1398 = vsel %vm1392, %v1281, %v1349
      %v1400 = vsel %vm1392, %v1282, %v1351
      %v1402 = vsel %vm1392, %v1283, %v1353
      %v1404 = vsel %vm1392, %v1284, %v1355
      %v1406 = vsel %vm1392, %v1285, %v1357
      %v1408 = vsel %vm1392, %v1286, %v1359
      %vm1409 = vcmask 64512
      %v1411 = vsel %vm1409, %v1394, %v1377
      %v1413 = vsel %vm1409, %v1396, %v1379
      %v1415 = vsel %vm1409, %v1398, %v1381
      %v1417 = vsel %vm1409, %v1400, %v1383
      %v1419 = vsel %vm1409, %v1402, %v1385
      %v1421 = vsel %vm1409, %v1404, %v1387
      %v1423 = vsel %vm1409, %v1406, %v1389
      %v1425 = vsel %vm1409, %v1408, %v1391
      %v1426 = vld [vmem:[%s1] sm:$0xf]
      %v1427 = vld [vmem:[%s1 + $0x4] sm:$0x3]
      %v1429 = vshrl.u32 %v1287, 16
      %v1431 = vshll.u32 %v1287, 16
      %v1433 = vrot.slane %v1431, 1
      %v1434 = vor.u32 %v1429, %v1433
      %1435 = vrot.lane.b32.xlu0 %v1434, 4
      %v1436 = vpop.permute.xlu0 %1435
      %v1438 = vrot.slane %v1287, 1
      %1439 = vrot.lane.b32.xlu0 %v1438, 8
      %v1440 = vpop.permute.xlu0 %1439
      %v1442 = vsel %vm1392, %v1287, %v1436
      %v1444 = vsel %vm1409, %v1442, %v1440
      %s1445 = scalar_lea.vmem %s1, 8
      %v1446 = vld [vmem:[%s1445] sm:$0xf]
      %v1447 = vld [vmem:[%s1445 + $0x4] sm:$0x3]
      %v1456 = vunpack.c.l.b16 %v1413
      %v1457 = vunpack.c.l.b16 %v1415
      %v1458 = vunpack.c.l.b16 %v1417
      %v1459 = vunpack.c.l.b16 %v1419
      %v1460 = vunpack.c.l.b16 %v1421
      %v1461 = vunpack.c.l.b16 %v1423
      %v1462 = vunpack.c.l.b16 %v1425
      %v1463 = vunpack.c.l.b16 %v1444
      %v1464 = vpack.c.b16 %v1457, %v1456
      %v1465 = vpack.c.b16 %v1459, %v1458
      %v1466 = vpack.c.b16 %v1461, %v1460
      %v1467 = vpack.c.b16 %v1463, %v1462
      %v1470 = vunpack.c.l.b16 %v1446
      %v1471 = vunpack.c.l.b16 %v1447
      %v1472 = vpack.c.b16 %v1471, %v1470
      %vm1473 = vcmask 97280
      %v1475 = vsel %vm1473, %v1464, 0
      %v1478 = vsel %vm1473, %v1465, 0
      %v1481 = vsel %vm1473, %v1466, 0
      %v1484 = vsel %vm1473, %v1467, 0
      %vm1486 = vcmask 1045504
      %v1488 = vsel %vm1486, %v1472, 0
      %1490 = vmatprep.subr.bf16.mxu0 0
      %1491 = vmatpush1.bf16.msra.mxu0 %v1488
      %1492 = vmatprep.subr.bf16.mxu0 0
      %1493 = vmatpush1.bf16.msra.mxu0 0
      %1494 = vmatprep.subr.bf16.mxu0 0
      %1495 = vmatpush1.bf16.msra.mxu0 0
      %1496 = vmatprep.subr.bf16.mxu0 0
      %1497 = vmatpush1.bf16.msra.mxu0 0
      %1498 = vmatprep.subr.bf16.mxu0 0
      %1499 = vmatpush1.bf16.msra.mxu0 0
      %1500 = vmatprep.subr.bf16.mxu0 0
      %1501 = vmatpush1.bf16.msra.mxu0 0
      %1502 = vmatprep.subr.bf16.mxu0 0
      %1503 = vmatpush1.bf16.msra.mxu0 0
      %1504 = vmatprep.subr.bf16.mxu0 0
      %1505 = vmatpush1.bf16.msra.mxu0 0
      %1506 = vmatprep.subr.bf16.mxu0 0
      %1507 = vmatpush1.bf16.msra.mxu0 0
      %1508 = vmatprep.subr.bf16.mxu0 0
      %1509 = vmatpush1.bf16.msra.mxu0 0
      %1510 = vmatprep.subr.bf16.mxu0 0
      %1511 = vmatpush1.bf16.msra.mxu0 0
      %1512 = vmatprep.subr.bf16.mxu0 0
      %1513 = vmatpush1.bf16.msra.mxu0 0
      %1514 = vmatprep.subr.bf16.mxu0 0
      %1515 = vmatpush1.bf16.msra.mxu0 0
      %1516 = vmatprep.subr.bf16.mxu0 0
      %1517 = vmatpush1.bf16.msra.mxu0 0
      %1518 = vmatprep.subr.bf16.mxu0 0
      %1519 = vmatpush1.bf16.msra.mxu0 0
      %1520 = vmatprep.subr.bf16.mxu0 0
      %1521 = vmatpush1.bf16.msra.mxu0 0
      %1522 = vmatprep.mubr.bf16.mxu0 0
      %1523 = vmatmul.mubr.bf16.gmra.mrb[0].mxu0 %v1475
      %v1524 = vpop.f32.mrb[0].mxu0
      %v1525 = vadd.f32 0.0, %v1524
      %v1526 = vpop.f32.mrb[0].mxu0
      %v1527 = vpop.f32.mrb[0].mxu0
      %v1528 = vadd.f32 0.0, %v1527
      %v1529 = vpop.f32.mrb[0].mxu0
      %1530 = vmatprep.mubr.bf16.mxu0 0
      %1531 = vmatmul.mubr.bf16.gmra.mrb[0].mxu0 %v1478
      %v1532 = vpop.f32.mrb[0].mxu0
      %v1533 = vadd.f32 0.0, %v1532
      %v1534 = vpop.f32.mrb[0].mxu0
      %v1535 = vpop.f32.mrb[0].mxu0
      %v1536 = vadd.f32 0.0, %v1535
      %v1537 = vpop.f32.mrb[0].mxu0
      %1538 = vmatprep.mubr.bf16.mxu0 0
      %1539 = vmatmul.mubr.bf16.gmra.mrb[0].mxu0 %v1481
      %v1540 = vpop.f32.mrb[0].mxu0
      %v1541 = vadd.f32 0.0, %v1540
      %v1542 = vpop.f32.mrb[0].mxu0
      %v1543 = vpop.f32.mrb[0].mxu0
      %v1544 = vadd.f32 0.0, %v1543
      %v1545 = vpop.f32.mrb[0].mxu0
      %1546 = vmatprep.mubr.bf16.mxu0 0
      %1547 = vmatmul.mubr.bf16.gmra.mrb[0].mxu0 %v1484
      %v1548 = vpop.f32.mrb[0].mxu0
      %v1549 = vadd.f32 0.0, %v1548
      %v1550 = vpop.f32.mrb[0].mxu0
      %v1551 = vpop.f32.mrb[0].mxu0
      %v1552 = vadd.f32 0.0, %v1551
      %v1553 = vpop.f32.mrb[0].mxu0
      %1554 = vdwg.mxu0
      %v1556 = vunpack.c.l.b16 %v1411
      %v1557 = vpack.c.b16 %v1456, %v1556
      %v1558 = vpack.c.b16 %v1458, %v1457
      %v1559 = vpack.c.b16 %v1460, %v1459
      %v1560 = vpack.c.b16 %v1462, %v1461
      %v1563 = vunpack.c.l.b16 %v1426
      %v1564 = vunpack.c.l.b16 %v1427
      %v1565 = vpack.c.b16 %v1564, %v1563
      %v1567 = vsel %vm1473, %v1557, 0
      %v1570 = vsel %vm1473, %v1558, 0
      %v1573 = vsel %vm1473, %v1559, 0
      %v1576 = vsel %vm1473, %v1560, 0
      %v1579 = vsel %vm1486, %v1565, 0
      %1581 = vmatprep.subr.bf16.mxu0 0
      %1582 = vmatpush1.bf16.msra.mxu0 %v1579
      %1583 = vmatprep.subr.bf16.mxu0 0
      %1584 = vmatpush1.bf16.msra.mxu0 0
      %1585 = vmatprep.subr.bf16.mxu0 0
      %1586 = vmatpush1.bf16.msra.mxu0 0
      %1587 = vmatprep.subr.bf16.mxu0 0
      %1588 = vmatpush1.bf16.msra.mxu0 0
      %1589 = vmatprep.subr.bf16.mxu0 0
      %1590 = vmatpush1.bf16.msra.mxu0 0
      %1591 = vmatprep.subr.bf16.mxu0 0
      %1592 = vmatpush1.bf16.msra.mxu0 0
      %1593 = vmatprep.subr.bf16.mxu0 0
      %1594 = vmatpush1.bf16.msra.mxu0 0
      %1595 = vmatprep.subr.bf16.mxu0 0
      %1596 = vmatpush1.bf16.msra.mxu0 0
      %1597 = vmatprep.subr.bf16.mxu0 0
      %1598 = vmatpush1.bf16.msra.mxu0 0
      %1599 = vmatprep.subr.bf16.mxu0 0
      %1600 = vmatpush1.bf16.msra.mxu0 0
      %1601 = vmatprep.subr.bf16.mxu0 0
      %1602 = vmatpush1.bf16.msra.mxu0 0
      %1603 = vmatprep.subr.bf16.mxu0 0
      %1604 = vmatpush1.bf16.msra.mxu0 0
      %1605 = vmatprep.subr.bf16.mxu0 0
      %1606 = vmatpush1.bf16.msra.mxu0 0
      %1607 = vmatprep.subr.bf16.mxu0 0
      %1608 = vmatpush1.bf16.msra.mxu0 0
      %1609 = vmatprep.subr.bf16.mxu0 0
      %1610 = vmatpush1.bf16.msra.mxu0 0
      %1611 = vmatprep.subr.bf16.mxu0 0
      %1612 = vmatpush1.bf16.msra.mxu0 0
      %1613 = vmatprep.mubr.bf16.mxu0 0
      %1614 = vmatmul.mubr.bf16.gmra.mrb[0].mxu0 %v1567
      %v1615 = vpop.f32.mrb[0].mxu0
      %v1616 = vadd.f32 %v1525, %v1615
      %v1617 = vpop.f32.mrb[0].mxu0
      %v1618 = vpop.f32.mrb[0].mxu0
      %v1619 = vadd.f32 %v1528, %v1618
      %v1620 = vpop.f32.mrb[0].mxu0
      %1621 = vmatprep.mubr.bf16.mxu0 0
      %1622 = vmatmul.mubr.bf16.gmra.mrb[0].mxu0 %v1570
      %v1623 = vpop.f32.mrb[0].mxu0
      %v1624 = vadd.f32 %v1533, %v1623
      %v1625 = vpop.f32.mrb[0].mxu0
      %v1626 = vpop.f32.mrb[0].mxu0
      %v1627 = vadd.f32 %v1536, %v1626
      %v1628 = vpop.f32.mrb[0].mxu0
      %1629 = vmatprep.mubr.bf16.mxu0 0
      %1630 = vmatmul.mubr.bf16.gmra.mrb[0].mxu0 %v1573
      %v1631 = vpop.f32.mrb[0].mxu0
      %v1632 = vadd.f32 %v1541, %v1631
      %v1633 = vpop.f32.mrb[0].mxu0
      %v1634 = vpop.f32.mrb[0].mxu0
      %v1635 = vadd.f32 %v1544, %v1634
      %v1636 = vpop.f32.mrb[0].mxu0
      %1637 = vmatprep.mubr.bf16.mxu0 0
      %1638 = vmatmul.mubr.bf16.gmra.mrb[0].mxu0 %v1576
      %v1639 = vpop.f32.mrb[0].mxu0
      %v1640 = vadd.f32 %v1549, %v1639
      %v1641 = vpop.f32.mrb[0].mxu0
      %v1642 = vpop.f32.mrb[0].mxu0
      %v1643 = vadd.f32 %v1552, %v1642
      %v1644 = vpop.f32.mrb[0].mxu0
      %1645 = vdwg.mxu0
      %s1646 = scalar_lea.vmem %s1, 16
      %v1647 = vld [vmem:[%s1646] sm:$0xf]
      %v1648 = vld [vmem:[%s1646 + $0x4] sm:$0x3]
      %v1649 = vpack.c.b16 %v1556, %v1463
      %v1652 = vunpack.c.l.b16 %v1647
      %v1653 = vunpack.c.l.b16 %v1648
      %v1654 = vpack.c.b16 %v1653, %v1652
      %v1656 = vsel %vm1473, %v1649, 0
      %v1659 = vsel %vm1486, %v1654, 0
      %1661 = vmatprep.subr.bf16.mxu0 0
      %1662 = vmatpush1.bf16.msra.mxu0 %v1659
      %1663 = vmatprep.subr.bf16.mxu0 0
      %1664 = vmatpush1.bf16.msra.mxu0 0
      %1665 = vmatprep.subr.bf16.mxu0 0
      %1666 = vmatpush1.bf16.msra.mxu0 0
      %1667 = vmatprep.subr.bf16.mxu0 0
      %1668 = vmatpush1.bf16.msra.mxu0 0
      %1669 = vmatprep.subr.bf16.mxu0 0
      %1670 = vmatpush1.bf16.msra.mxu0 0
      %1671 = vmatprep.subr.bf16.mxu0 0
      %1672 = vmatpush1.bf16.msra.mxu0 0
      %1673 = vmatprep.subr.bf16.mxu0 0
      %1674 = vmatpush1.bf16.msra.mxu0 0
      %1675 = vmatprep.subr.bf16.mxu0 0
      %1676 = vmatpush1.bf16.msra.mxu0 0
      %1677 = vmatprep.subr.bf16.mxu0 0
      %1678 = vmatpush1.bf16.msra.mxu0 0
      %1679 = vmatprep.subr.bf16.mxu0 0
      %1680 = vmatpush1.bf16.msra.mxu0 0
      %1681 = vmatprep.subr.bf16.mxu0 0
      %1682 = vmatpush1.bf16.msra.mxu0 0
      %1683 = vmatprep.subr.bf16.mxu0 0
      %1684 = vmatpush1.bf16.msra.mxu0 0
      %1685 = vmatprep.subr.bf16.mxu0 0
      %1686 = vmatpush1.bf16.msra.mxu0 0
      %1687 = vmatprep.subr.bf16.mxu0 0
      %1688 = vmatpush1.bf16.msra.mxu0 0
      %1689 = vmatprep.subr.bf16.mxu0 0
      %1690 = vmatpush1.bf16.msra.mxu0 0
      %1691 = vmatprep.subr.bf16.mxu0 0
      %1692 = vmatpush1.bf16.msra.mxu0 0
      %1693 = vmatprep.mubr.bf16.mxu0 0
      %1694 = vmatmul.mubr.bf16.gmra.mrb[0].mxu0 %v1570
      %v1695 = vpop.f32.mrb[0].mxu0
      %v1696 = vadd.f32 0.0, %v1695
      %v1697 = vpop.f32.mrb[0].mxu0
      %v1698 = vpop.f32.mrb[0].mxu0
      %v1699 = vadd.f32 0.0, %v1698
      %v1700 = vpop.f32.mrb[0].mxu0
      %1701 = vmatprep.mubr.bf16.mxu0 0
      %1702 = vmatmul.mubr.bf16.gmra.mrb[0].mxu0 %v1573
      %v1703 = vpop.f32.mrb[0].mxu0
      %v1704 = vadd.f32 0.0, %v1703
      %v1705 = vpop.f32.mrb[0].mxu0
      %v1706 = vpop.f32.mrb[0].mxu0
      %v1707 = vadd.f32 0.0, %v1706
      %v1708 = vpop.f32.mrb[0].mxu0
      %1709 = vmatprep.mubr.bf16.mxu0 0
      %1710 = vmatmul.mubr.bf16.gmra.mrb[0].mxu0 %v1576
      %v1711 = vpop.f32.mrb[0].mxu0
      %v1712 = vadd.f32 0.0, %v1711
      %v1713 = vpop.f32.mrb[0].mxu0
      %v1714 = vpop.f32.mrb[0].mxu0
      %v1715 = vadd.f32 0.0, %v1714
      %v1716 = vpop.f32.mrb[0].mxu0
      %1717 = vmatprep.mubr.bf16.mxu0 0
      %1718 = vmatmul.mubr.bf16.gmra.mrb[0].mxu0 %v1656
      %v1719 = vpop.f32.mrb[0].mxu0
      %v1720 = vadd.f32 0.0, %v1719
      %v1721 = vpop.f32.mrb[0].mxu0
      %v1722 = vpop.f32.mrb[0].mxu0
      %v1723 = vadd.f32 0.0, %v1722
      %v1724 = vpop.f32.mrb[0].mxu0
      %1725 = vdwg.mxu0
      %v1726 = vadd.f32 %v1616, %v1696
      %v1727 = vadd.f32 %v1619, %v1699
      %v1728 = vadd.f32 %v1624, %v1704
      %v1729 = vadd.f32 %v1627, %v1707
      %v1730 = vadd.f32 %v1632, %v1712
      %v1731 = vadd.f32 %v1635, %v1715
      %v1732 = vadd.f32 %v1640, %v1720
      %v1733 = vadd.f32 %v1643, %v1723
      %v1734 = vpack.c.bf16 %v1727, %v1726
      %v1735 = vpack.c.bf16 %v1729, %v1728
      %v1736 = vpack.c.bf16 %v1731, %v1730
      %v1737 = vpack.c.bf16 %v1733, %v1732
      %v1742 = vunpack.c.l.b16 %v1734
      %v1743 = vunpack.c.h.b16 %v1734
      %v1744 = vunpack.c.l.b16 %v1735
      %v1745 = vunpack.c.h.b16 %v1735
      %v1746 = vunpack.c.l.b16 %v1736
      %v1747 = vunpack.c.h.b16 %v1736
      %v1748 = vunpack.c.l.b16 %v1737
      %v1749 = vunpack.c.h.b16 %v1737
      %v1750 = vpack.c.b16 %v1742, %v1742
      %v1751 = vpack.c.b16 %v1743, %v1743
      %v1752 = vpack.c.b16 %v1744, %v1744
      %v1753 = vpack.c.b16 %v1745, %v1745
      %v1754 = vpack.c.b16 %v1746, %v1746
      %v1755 = vpack.c.b16 %v1747, %v1747
      %v1756 = vpack.c.b16 %v1748, %v1748
      %v1757 = vpack.c.b16 %v1749, %v1749
      %vm1766 = vcmask 60416
      %1767 = vst.msk [vmem:[%s176] sm:$0xf] %vm1766, %v1750
      %1768 = vst.msk [vmem:[%s176 + $0x4] sm:$0xf] %vm1766, %v1751
      %1769 = vst.msk [vmem:[%s176 + $0x8] sm:$0xf] %vm1766, %v1752
      %1770 = vst.msk [vmem:[%s176 + $0xc] sm:$0xf] %vm1766, %v1753
      %1771 = vst.msk [vmem:[%s176 + $0x10] sm:$0xf] %vm1766, %v1754
      %1772 = vst.msk [vmem:[%s176 + $0x14] sm:$0xf] %vm1766, %v1755
      %1773 = vst.msk [vmem:[%s176 + $0x18] sm:$0xf] %vm1766, %v1756
      %1774 = vst.msk [vmem:[%s176 + $0x1c] sm:$0xf] %vm1766, %v1757
      %v1775 = vsel %vm1409, %v1726, 0.0
      %v1776 = vsel %vm1409, %v1727, 0.0
      %v1777 = vadd.f32 %v1775, %v1776
      %v1778 = vsel %vm1409, %v1728, 0.0
      %v1779 = vadd.f32 %v1777, %v1778
      %v1780 = vsel %vm1409, %v1729, 0.0
      %v1781 = vadd.f32 %v1779, %v1780
      %v1782 = vsel %vm1409, %v1730, 0.0
      %v1783 = vadd.f32 %v1781, %v1782
      %v1784 = vsel %vm1409, %v1731, 0.0
      %v1785 = vadd.f32 %v1783, %v1784
      %v1786 = vsel %vm1409, %v1732, 0.0
      %v1787 = vadd.f32 %v1785, %v1786
      %v1788 = vsel %vm1409, %v1733, 0.0
      %v1789 = vadd.f32 %v1787, %v1788
      %v1790 = vrot.slane %v1789, 4
      %v1791 = vadd.f32 %v1789, %v1790
      %v1792 = vrot.slane %v1791, 2
      %v1793 = vadd.f32 %v1791, %v1792
      %v1794 = vrot.slane %v1793, 1
      %v1795 = vadd.f32 %v1793, %v1794
      %v1796 = vmul.f32 %v1726, %v1726
      %v1797 = vmul.f32 %v1727, %v1727
      %v1798 = vmul.f32 %v1728, %v1728
      %v1799 = vmul.f32 %v1729, %v1729
      %v1800 = vmul.f32 %v1730, %v1730
      %v1801 = vmul.f32 %v1731, %v1731
      %v1802 = vmul.f32 %v1732, %v1732
      %v1803 = vmul.f32 %v1733, %v1733
      %v1804 = vsel %vm1409, %v1796, 0.0
      %v1805 = vsel %vm1409, %v1797, 0.0
      %v1806 = vadd.f32 %v1804, %v1805
      %v1807 = vsel %vm1409, %v1798, 0.0
      %v1808 = vadd.f32 %v1806, %v1807
      %v1809 = vsel %vm1409, %v1799, 0.0
      %v1810 = vadd.f32 %v1808, %v1809
      %v1811 = vsel %vm1409, %v1800, 0.0
      %v1812 = vadd.f32 %v1810, %v1811
      %v1813 = vsel %vm1409, %v1801, 0.0
      %v1814 = vadd.f32 %v1812, %v1813
      %v1815 = vsel %vm1409, %v1802, 0.0
      %v1816 = vadd.f32 %v1814, %v1815
      %v1817 = vsel %vm1409, %v1803, 0.0
      %v1818 = vadd.f32 %v1816, %v1817
      %v1819 = vrot.slane %v1818, 4
      %v1820 = vadd.f32 %v1818, %v1819
      %v1821 = vrot.slane %v1820, 2
      %v1822 = vadd.f32 %v1820, %v1821
      %v1823 = vrot.slane %v1822, 1
      %v1824 = vadd.f32 %v1822, %v1823
      %1826 = vrot.lane.b32.xlu0 %v1824, 8
      %v1827 = vpop.permute.xlu0 %1826
      %v1829 = vsel %vm1409, %v1795, %v1827
      %vm1830 = vcmask 122880
      %1831 = vst.msk [vmem:[%s179] sm:$0x1] %vm1830, %v1829
      %p1832 = scmp.lt.s32.totalorder %s15, 1
      %s1833 = scalar_select %p1832, %s15, 1
      %s1834 = smul.addr %s1833, 8
      %s1835 = smul.addr %s1834, 4
      %s1836 = scalar_lea.vmem %s2, %s1835
      %p1837 = scmp.lt.s32.totalorder %s15, 1
      %s1838 = scalar_select %p1837, %s15, 1
      %s1839 = scalar_lea.vmem %s3, %s1838
      // Predicated region
      $region29: #{down_pallas.3} parent=27 // pred_check
        %p1840 = pneg %p80
      $region30: #{down_pallas.3} parent=27 // pred_check_branch
        %1842 = sbr.rel (%p1840) target = $region32
      $region31: #{down_pallas.3} parent=27 // pred_region
        _
      $region32: #{down_pallas.3} parent=27 // pred_fallthru
        _
      // Predicated region
      $region33: #{down_pallas.3} parent=27 // pred_check
        %p1843 = pneg %p106
      $region34: #{down_pallas.3} parent=27 // pred_check_branch
        %1845 = sbr.rel (%p1843) target = $region36
      $region35: #{down_pallas.3} parent=27 // pred_region
        _
      $region36: #{down_pallas.3} parent=27 // pred_fallthru
        _
    $region28: #{down_pallas.3} parent=5 // pred_fallthru
      _
    %p1846 = scmp.le.s32.totalorder 2, %s10
    // Predicated region
    $region37: #{down_pallas.3} parent=5 // pred_check
      %p1847 = pneg %p1846
    $region38: #{down_pallas.3} parent=5 // pred_check_branch
      %1849 = sbr.rel (%p1847) target = $region40
    $region39: #{down_pallas.3} parent=5 // pred_region
      %s1850 = ssub.s32 %s10, 2
      // Predicated region
      $region41: #{down_pallas.3} parent=39 // pred_check
        %p1851 = pneg %p86
      $region42: #{down_pallas.3} parent=39 // pred_check_branch
        %1853 = sbr.rel (%p1851) target = $region44
      $region43: #{down_pallas.3} parent=39 // pred_region
        %p1854 = scmp.lt.s32.totalorder %s16, 1
        %s1855 = scalar_select %p1854, %s16, 1
        %s1856 = smul.addr %s1855, 8
        %s1857 = smul.addr %s1856, 4
        %s1858 = scalar_lea.vmem %s2, %s1857
      $region44: #{down_pallas.3} parent=39 // pred_fallthru
        _
      // Predicated region
      $region45: #{down_pallas.3} parent=39 // pred_check
        %p1859 = pneg %p112
      $region46: #{down_pallas.3} parent=39 // pred_check_branch
        %1861 = sbr.rel (%p1859) target = $region48
      $region47: #{down_pallas.3} parent=39 // pred_region
        %p1862 = scmp.lt.s32.totalorder %s16, 1
        %s1863 = scalar_select %p1862, %s16, 1
        %s1864 = scalar_lea.vmem %s3, %s1863
      $region48: #{down_pallas.3} parent=39 // pred_fallthru
        _
    $region40: #{down_pallas.3} parent=5 // pred_fallthru
      _
  $region6: #{down_pallas.3} parent=0 // loop_footer
    %s14 = sadd.s32 1, %s10
  $region7: #{down_pallas.3} parent=0 // loop_footer_branch
    %9 = sbr.rel target = $region3
  $region8: #{down_pallas.3} parent=0 // loop_exit
    _

</llo_original>
